<compile_context>
chip_gen: v7x
topology: tpu7x:2x2x1
jax: 0.10.0
libtpu: 0.0.40
codegen_flags: <defaults>
</compile_context>

<pallas_src>
import functools

import jax
import jax.numpy as jnp
from jax import lax
from jax.experimental import pallas as pl
from jax.experimental.pallas import tpu as pltpu


# ------------------------------- Pallas kernel ------------------------------ #

def _bottleneck_kernel(x_ref, w1_ref, w2_ref, w3_ref,
                       b1_ref, b2_ref, b3_ref,
                       o_ref, pad_ref):
    """Fused Bottleneck for one NHWC image.

    x_ref  : (H, W, Cin)            input image, io/compute dtype
    w1_ref : (Cin, Cw)              1x1 conv weights (BN1 scale folded in)
    w2_ref : (9*Cw, Cw) or (3, 3*Cw, Cw)
                                    3x3 conv weights (BN2 scale folded in),
                                    pre-reshaped host-side for K-concat matmuls
    w3_ref : (Cw, Cout)             1x1 conv weights (BN3 scale folded in)
    b*_ref : (1, C)                 folded BatchNorm biases (f32)
    o_ref  : (H, W, Cout)           output image (io/compute dtype)
    pad_ref: VMEM (H+2, W+2, Cw)    zero-padded conv1 output, compute dtype
    """
    H, W, Cin = x_ref.shape
    Cw = pad_ref.shape[-1]
    Cout = b3_ref.shape[-1]
    cdt = w1_ref.dtype                       # MXU compute dtype (bf16 or f32)

    x2d = x_ref[...].reshape(H * W, Cin)     # used by conv1 AND the residual

    # ---- zero only the 1-wide halo of the padded scratch --------------------
    # The interior is fully overwritten by the conv1 store below.  Zero every
    # grid step (cheap: O(perimeter)); never guard with program_id, which
    # would be unsafe when the batch axis is sharded across TensorCores.
    zrow = jnp.zeros((1, W + 2, Cw), cdt)
    pad_ref[0:1, :, :] = zrow
    pad_ref[H + 1:H + 2, :, :] = zrow
    zcol = jnp.zeros((H, 1, Cw), cdt)
    pad_ref[1:H + 1, 0:1, :] = zcol
    pad_ref[1:H + 1, W + 1:W + 2, :] = zcol

    # ---- conv1 (1x1) + bn1 (bias only; scale folded) + relu -----------------
    y1 = jnp.dot(x2d.astype(cdt), w1_ref[...],
                 preferred_element_type=jnp.float32)
    y1 = jnp.maximum(y1 + b1_ref[...], 0.0)
    pad_ref[1:H + 1, 1:W + 1, :] = y1.reshape(H, W, Cw).astype(cdt)

    # ---- conv2 (3x3, stride 1, pad 1) + bn2 + relu --------------------------
    # Accumulate over K inside the MXU: shifted windows concatenated along the
    # contraction axis.  Patches are already in the compute dtype (no per-tap
    # casts).
    if w2_ref.ndim == 2:
        # Full im2col: a single (H*W, 9*Cw) @ (9*Cw, Cw) matmul.
        pats = [pad_ref[kh:kh + H, kw:kw + W, :].reshape(H * W, Cw)
                for kh in range(3) for kw in range(3)]
        pcat = jnp.concatenate(pats, axis=-1)                  # (H*W, 9*Cw)
        acc = jnp.dot(pcat, w2_ref[...], preferred_element_type=jnp.float32)
    else:
        # Three K=3*Cw matmuls (one per kernel row), f32 accumulation.
        acc = jnp.zeros((H * W, Cw), jnp.float32)
        for kh in range(3):
            pats = [pad_ref[kh:kh + H, kw:kw + W, :].reshape(H * W, Cw)
                    for kw in range(3)]
            pcat = jnp.concatenate(pats, axis=-1)              # (H*W, 3*Cw)
            acc = acc + jnp.dot(pcat, w2_ref[kh],
                                preferred_element_type=jnp.float32)
    y2 = jnp.maximum(acc + b2_ref[...], 0.0)                   # (H*W, Cw) f32

    # ---- conv3 (1x1) + bn3 + residual add + relu ----------------------------
    y3 = jnp.dot(y2.astype(cdt), w3_ref[...],
                 preferred_element_type=jnp.float32)
    y3 = y3 + b3_ref[...] + x2d.astype(jnp.float32)
    o_ref[...] = jnp.maximum(y3, 0.0).reshape(H, W, Cout).astype(o_ref.dtype)


# ------------------------------ wrappers ------------------------------------ #

def fold_bn(gamma, beta, mean, var, eps=1e-5):
    scale = gamma / jnp.sqrt(var + eps)
    bias = beta - mean * scale
    return scale.astype(jnp.float32), bias.astype(jnp.float32)


def _vmem_limit_bytes():
    """0.75x of the actual chip's VMEM capacity (48 MiB v7x, 96 MiB v5e/v6e)."""
    try:
        cap = pltpu.get_tpu_info().vmem_capacity_bytes
        return int(0.75 * cap)
    except Exception:
        return 48 * 2**20        # safe on every generation


def bottleneck_forward_nhwc(x_nhwc, params, *, compute_dtype=jnp.bfloat16):
    """Fused Bottleneck forward, NHWC in / NHWC out (stride=1, no downsample).

    Activations are moved through HBM in `compute_dtype` (bf16 by default),
    halving input/output HBM bytes; accumulation and epilogues stay f32.
    """
    B, H, W, Cin = x_nhwc.shape
    w1, w2, w3 = params["w1"], params["w2"], params["w3"]
    Cw, Cout = w1.shape[1], w3.shape[1]
    if Cout != Cin:
        raise ValueError("residual path requires inplanes == planes * 4; "
                         "downsample is not implemented")

    s1, b1 = fold_bn(*params["bn1"])
    s2, b2 = fold_bn(*params["bn2"])
    s3, b3 = fold_bn(*params["bn3"])
    b1, b2, b3 = [a.reshape(1, -1) for a in (b1, b2, b3)]

    # Fold BN scales into the conv weights (per output channel); cast weights
    # to the MXU compute dtype.  Only biases enter the kernel epilogues.
    w1c = (w1 * s1[None, :]).astype(compute_dtype)
    w2f = w2 * s2[None, None, None, :]                 # HWIO, scale on O
    w3c = (w3 * s3[None, :]).astype(compute_dtype)
    if Cw <= 64:
        # Full im2col in-kernel: present w2 as (9*Cw, Cw).
        w2c = w2f.reshape(9 * Cw, Cw).astype(compute_dtype)
        w2_spec = pl.BlockSpec((9 * Cw, Cw), lambda b: (0, 0))
    else:
        # Row-wise K-concat: present w2 as (3, 3*Cw, Cw).
        w2c = w2f.reshape(3, 3 * Cw, Cw).astype(compute_dtype)
        w2_spec = pl.BlockSpec((3, 3 * Cw, Cw), lambda b: (0, 0, 0))

    # bf16 activation I/O (f32 only on the exact-check path).
    io_dtype = compute_dtype
    x_io = x_nhwc.astype(io_dtype)

    in_specs = [
        # x: one NHWC image per grid step (batch dim squeezed).
        pl.BlockSpec((None, H, W, Cin), lambda b: (b, 0, 0, 0)),
        # weights: grid-invariant index_map -> stay resident in VMEM.
        pl.BlockSpec((Cin, Cw), lambda b: (0, 0)),
        w2_spec,
        pl.BlockSpec((Cw, Cout), lambda b: (0, 0)),
        # folded BatchNorm biases (f32).
        pl.BlockSpec((1, Cw), lambda b: (0, 0)),
        pl.BlockSpec((1, Cw), lambda b: (0, 0)),
        pl.BlockSpec((1, Cout), lambda b: (0, 0)),
    ]
    out_spec = pl.BlockSpec((None, H, W, Cout), lambda b: (b, 0, 0, 0))

    return pl.pallas_call(
        _bottleneck_kernel,
        out_shape=jax.ShapeDtypeStruct((B, H, W, Cout), io_dtype),
        grid_spec=pltpu.PrefetchScalarGridSpec(
            num_scalar_prefetch=0,
            grid=(B,),
            in_specs=in_specs,
            out_specs=out_spec,
            scratch_shapes=[pltpu.VMEM((H + 2, W + 2, Cw), compute_dtype)]),
        compiler_params=pltpu.CompilerParams(
            dimension_semantics=("parallel",),   # v7x: shard batch over 2 TCs
            vmem_limit_bytes=_vmem_limit_bytes()),
    )(x_io, w1c, w2c, w3c, b1, b2, b3)


def bottleneck_forward(x_nchw, params, *, compute_dtype=jnp.bfloat16):
    """PyTorch-parity wrapper (NCHW in / NCHW out, output in compute_dtype).

    Prefer bottleneck_forward_nhwc in an NHWC model: each transpose below is
    an extra full-tensor HBM pass in XLA.
    """
    x = jnp.transpose(x_nchw, (0, 2, 3, 1))
    y = bottleneck_forward_nhwc(x, params, compute_dtype=compute_dtype)
    return jnp.transpose(y, (0, 3, 1, 2))


# ------------------------------ params / reference -------------------------- #

def init_params(key, inplanes, planes, base_width=64, groups=1):
    width = int(planes * (base_width / 64.0)) * groups
    outp = planes * 4  # expansion
    ks = jax.random.split(key, 15)

    def bn(k0, k1, k2, k3, c):
        gamma = 0.5 + jax.random.uniform(k0, (c,), jnp.float32)
        beta = 0.1 * jax.random.normal(k1, (c,), jnp.float32)
        mean = 0.1 * jax.random.normal(k2, (c,), jnp.float32)
        var = 0.5 + jax.random.uniform(k3, (c,), jnp.float32)
        return gamma, beta, mean, var

    p = {}
    p["w1"] = 0.1 * jax.random.normal(ks[0], (inplanes, width), jnp.float32)
    p["bn1"] = bn(ks[1], ks[2], ks[3], ks[4], width)
    p["w2"] = 0.1 * jax.random.normal(ks[5], (3, 3, width, width), jnp.float32)
    p["bn2"] = bn(ks[6], ks[7], ks[8], ks[9], width)
    p["w3"] = 0.1 * jax.random.normal(ks[10], (width, outp), jnp.float32)
    p["bn3"] = bn(ks[11], ks[12], ks[13], ks[14], outp)
    return p


def bottleneck_reference(x_nchw, params):
    x = jnp.transpose(x_nchw, (0, 2, 3, 1))
    s1, b1 = fold_bn(*params["bn1"])
    s2, b2 = fold_bn(*params["bn2"])
    s3, b3 = fold_bn(*params["bn3"])

    def conv(inp, w_hwio):
        return lax.conv_general_dilated(
            inp, w_hwio, (1, 1), "SAME",
            dimension_numbers=("NHWC", "HWIO", "NHWC"),
            precision=lax.Precision.HIGHEST)

    out = conv(x, params["w1"].reshape(1, 1, *params["w1"].shape))
    out = jnp.maximum(out * s1 + b1, 0.0)
    out = conv(out, params["w2"])
    out = jnp.maximum(out * s2 + b2, 0.0)
    out = conv(out, params["w3"].reshape(1, 1, *params["w3"].shape))
    out = jnp.maximum(out * s3 + b3 + x, 0.0)
    return jnp.transpose(out, (0, 3, 1, 2))


# ---------------------------------- main ------------------------------------ #

if __name__ == "__main__":
    key = jax.random.PRNGKey(0)
    k_x, k_p = jax.random.split(key)

    # Small Bottleneck: inplanes == planes * 4 -> no downsample, stride 1.
    B, planes, H, W = 2, 16, 16, 16
    inplanes = planes * 4          # 64
    x = jax.random.normal(k_x, (B, inplanes, H, W), jnp.float32)  # NCHW
    params = init_params(k_p, inplanes, planes)

    ref = bottleneck_reference(x, params)

    # f32 MXU / f32-I/O path: tight numerical check against the f32 reference.
    fwd_f32 = jax.jit(functools.partial(bottleneck_forward,
                                        compute_dtype=jnp.float32))
    out_f32 = jax.block_until_ready(fwd_f32(x, params))
    assert out_f32.shape == (B, planes * 4, H, W), out_f32.shape
    err_f32 = float(jnp.max(jnp.abs(out_f32 - ref)))
    assert jnp.allclose(out_f32, ref, atol=1e-3, rtol=1e-3), err_f32

    # Default bf16 MXU / bf16-I/O path: looser tolerance (bf16 activations,
    # bf16 weights, bf16 output).
    fwd_bf16 = jax.jit(functools.partial(bottleneck_forward,
                                         compute_dtype=jnp.bfloat16))
    out_bf16 = jax.block_until_ready(fwd_bf16(x, params))
    out_bf16_f32 = out_bf16.astype(jnp.float32)
    err_bf16 = float(jnp.max(jnp.abs(out_bf16_f32 - ref)))
    assert jnp.allclose(out_bf16_f32, ref, atol=2.5e-1, rtol=5e-2), err_bf16

    print("KERNEL_OK")
</pallas_src>

<mosaic_0001>
module attributes {stable_mosaic.version = 11 : i64} {
  func.func @_bottleneck_kernel(%arg0: i32, %arg1: memref<1x16x16x64xf32, #tpu.memory_space<vmem>>, %arg2: memref<64x16xf32, #tpu.memory_space<vmem>>, %arg3: memref<144x16xf32, #tpu.memory_space<vmem>>, %arg4: memref<16x64xf32, #tpu.memory_space<vmem>>, %arg5: memref<1x16xf32, #tpu.memory_space<vmem>>, %arg6: memref<1x16xf32, #tpu.memory_space<vmem>>, %arg7: memref<1x64xf32, #tpu.memory_space<vmem>>, %arg8: memref<1x16x16x64xf32, #tpu.memory_space<vmem>>, %arg9: memref<18x18x16xf32, #tpu.memory_space<vmem>>) attributes {dimension_semantics = [#tpu.dimension_semantics<parallel>], iteration_bounds = array<i64: 2>, scalar_prefetch = 0 : i64, scratch_operands = 1 : i64, tpu.core_type = #tpu.core_type<tc>, window_params = [{transform_indices = @transform_0, window_bounds = array<i64: 1, 16, 16, 64>}, {pipeline_mode = #tpu.pipeline_mode<synchronous>, transform_indices = @transform_1, window_bounds = array<i64: 64, 16>}, {pipeline_mode = #tpu.pipeline_mode<synchronous>, transform_indices = @transform_2, window_bounds = array<i64: 144, 16>}, {pipeline_mode = #tpu.pipeline_mode<synchronous>, transform_indices = @transform_3, window_bounds = array<i64: 16, 64>}, {pipeline_mode = #tpu.pipeline_mode<synchronous>, transform_indices = @transform_4, window_bounds = array<i64: 1, 16>}, {pipeline_mode = #tpu.pipeline_mode<synchronous>, transform_indices = @transform_5, window_bounds = array<i64: 1, 16>}, {pipeline_mode = #tpu.pipeline_mode<synchronous>, transform_indices = @transform_6, window_bounds = array<i64: 1, 64>}, {transform_indices = @transform_7, window_bounds = array<i64: 1, 16, 16, 64>}]} {
    %c0 = arith.constant 0 : index
    %c0_0 = arith.constant 0 : index
    %c0_1 = arith.constant 0 : index
    %c0_2 = arith.constant 0 : index
    %0 = vector.load %arg1[%c0, %c0_0, %c0_1, %c0_2] : memref<1x16x16x64xf32, #tpu.memory_space<vmem>>, vector<1x16x16x64xf32>
    %1 = vector.shape_cast %0 : vector<1x16x16x64xf32> to vector<16x16x64xf32>
    %2 = vector.shape_cast %1 : vector<16x16x64xf32> to vector<256x64xf32>
    %cst = arith.constant 0.000000e+00 : f32
    %3 = vector.broadcast %cst : f32 to vector<1x18x16xf32>
    %c0_3 = arith.constant 0 : index
    %c0_4 = arith.constant 0 : index
    %c0_5 = arith.constant 0 : index
    %4 = vector.load %arg9[%c0_3, %c0_4, %c0_5] : memref<18x18x16xf32, #tpu.memory_space<vmem>>, vector<1x18x16xf32>
    tpu.vector_store %arg9[%c0_3, %c0_4, %c0_5], %3 {strides = array<i32>} : memref<18x18x16xf32, #tpu.memory_space<vmem>>, vector<1x18x16xf32>,
    %c17 = arith.constant 17 : index
    %c0_6 = arith.constant 0 : index
    %c0_7 = arith.constant 0 : index
    %5 = vector.load %arg9[%c17, %c0_6, %c0_7] : memref<18x18x16xf32, #tpu.memory_space<vmem>>, vector<1x18x16xf32>
    tpu.vector_store %arg9[%c17, %c0_6, %c0_7], %3 {strides = array<i32>} : memref<18x18x16xf32, #tpu.memory_space<vmem>>, vector<1x18x16xf32>,
    %cst_8 = arith.constant 0.000000e+00 : f32
    %6 = vector.broadcast %cst_8 : f32 to vector<16x1x16xf32>
    %c1 = arith.constant 1 : index
    %c0_9 = arith.constant 0 : index
    %c0_10 = arith.constant 0 : index
    %7 = vector.load %arg9[%c1, %c0_9, %c0_10] : memref<18x18x16xf32, #tpu.memory_space<vmem>>, vector<16x1x16xf32>
    tpu.vector_store %arg9[%c1, %c0_9, %c0_10], %6 {strides = array<i32>} : memref<18x18x16xf32, #tpu.memory_space<vmem>>, vector<16x1x16xf32>,
    %c1_11 = arith.constant 1 : index
    %c17_12 = arith.constant 17 : index
    %c0_13 = arith.constant 0 : index
    %8 = vector.load %arg9[%c1_11, %c17_12, %c0_13] : memref<18x18x16xf32, #tpu.memory_space<vmem>>, vector<16x1x16xf32>
    tpu.vector_store %arg9[%c1_11, %c17_12, %c0_13], %6 {strides = array<i32>} : memref<18x18x16xf32, #tpu.memory_space<vmem>>, vector<16x1x16xf32>,
    %c0_14 = arith.constant 0 : index
    %c0_15 = arith.constant 0 : index
    %9 = vector.load %arg2[%c0_14, %c0_15] : memref<64x16xf32, #tpu.memory_space<vmem>>, vector<64x16xf32>
    %cst_16 = arith.constant dense<0.000000e+00> : vector<256x16xf32>
    %10 = tpu.matmul %2, %9, %cst_16 {dimension_numbers = #tpu.dot_dimension_numbers<[1], [0], [0], [1], [0, 0, 1, 1], [], []>} : vector<256x64xf32>, vector<64x16xf32>, vector<256x16xf32> -> vector<256x16xf32>
    %c0_17 = arith.constant 0 : index
    %c0_18 = arith.constant 0 : index
    %11 = vector.load %arg5[%c0_17, %c0_18] : memref<1x16xf32, #tpu.memory_space<vmem>>, vector<1x16xf32>
    %12 = vector.broadcast %11 : vector<1x16xf32> to vector<256x16xf32>
    %13 = arith.addf %10, %12 : vector<256x16xf32>
    %cst_19 = arith.constant 0.000000e+00 : f32
    %14 = vector.broadcast %cst_19 : f32 to vector<256x16xf32>
    %15 = arith.maximumf %13, %14 : vector<256x16xf32>
    %16 = vector.shape_cast %15 : vector<256x16xf32> to vector<16x16x16xf32>
    %c1_20 = arith.constant 1 : index
    %c1_21 = arith.constant 1 : index
    %c0_22 = arith.constant 0 : index
    %17 = vector.load %arg9[%c1_20, %c1_21, %c0_22] : memref<18x18x16xf32, #tpu.memory_space<vmem>>, vector<16x16x16xf32>
    tpu.vector_store %arg9[%c1_20, %c1_21, %c0_22], %16 {strides = array<i32>} : memref<18x18x16xf32, #tpu.memory_space<vmem>>, vector<16x16x16xf32>,
    %c0_23 = arith.constant 0 : index
    %c0_24 = arith.constant 0 : index
    %c0_25 = arith.constant 0 : index
    %18 = vector.load %arg9[%c0_23, %c0_24, %c0_25] : memref<18x18x16xf32, #tpu.memory_space<vmem>>, vector<16x16x16xf32>
    %19 = vector.shape_cast %18 : vector<16x16x16xf32> to vector<256x16xf32>
    %c0_26 = arith.constant 0 : index
    %c1_27 = arith.constant 1 : index
    %c0_28 = arith.constant 0 : index
    %20 = vector.load %arg9[%c0_26, %c1_27, %c0_28] : memref<18x18x16xf32, #tpu.memory_space<vmem>>, vector<16x16x16xf32>
    %21 = vector.shape_cast %20 : vector<16x16x16xf32> to vector<256x16xf32>
    %c0_29 = arith.constant 0 : index
    %c2 = arith.constant 2 : index
    %c0_30 = arith.constant 0 : index
    %22 = vector.load %arg9[%c0_29, %c2, %c0_30] : memref<18x18x16xf32, #tpu.memory_space<vmem>>, vector<16x16x16xf32>
    %23 = vector.shape_cast %22 : vector<16x16x16xf32> to vector<256x16xf32>
    %c1_31 = arith.constant 1 : index
    %c0_32 = arith.constant 0 : index
    %c0_33 = arith.constant 0 : index
    %24 = vector.load %arg9[%c1_31, %c0_32, %c0_33] : memref<18x18x16xf32, #tpu.memory_space<vmem>>, vector<16x16x16xf32>
    %25 = vector.shape_cast %24 : vector<16x16x16xf32> to vector<256x16xf32>
    %c1_34 = arith.constant 1 : index
    %c1_35 = arith.constant 1 : index
    %c0_36 = arith.constant 0 : index
    %26 = vector.load %arg9[%c1_34, %c1_35, %c0_36] : memref<18x18x16xf32, #tpu.memory_space<vmem>>, vector<16x16x16xf32>
    %27 = vector.shape_cast %26 : vector<16x16x16xf32> to vector<256x16xf32>
    %c1_37 = arith.constant 1 : index
    %c2_38 = arith.constant 2 : index
    %c0_39 = arith.constant 0 : index
    %28 = vector.load %arg9[%c1_37, %c2_38, %c0_39] : memref<18x18x16xf32, #tpu.memory_space<vmem>>, vector<16x16x16xf32>
    %29 = vector.shape_cast %28 : vector<16x16x16xf32> to vector<256x16xf32>
    %c2_40 = arith.constant 2 : index
    %c0_41 = arith.constant 0 : index
    %c0_42 = arith.constant 0 : index
    %30 = vector.load %arg9[%c2_40, %c0_41, %c0_42] : memref<18x18x16xf32, #tpu.memory_space<vmem>>, vector<16x16x16xf32>
    %31 = vector.shape_cast %30 : vector<16x16x16xf32> to vector<256x16xf32>
    %c2_43 = arith.constant 2 : index
    %c1_44 = arith.constant 1 : index
    %c0_45 = arith.constant 0 : index
    %32 = vector.load %arg9[%c2_43, %c1_44, %c0_45] : memref<18x18x16xf32, #tpu.memory_space<vmem>>, vector<16x16x16xf32>
    %33 = vector.shape_cast %32 : vector<16x16x16xf32> to vector<256x16xf32>
    %c2_46 = arith.constant 2 : index
    %c2_47 = arith.constant 2 : index
    %c0_48 = arith.constant 0 : index
    %34 = vector.load %arg9[%c2_46, %c2_47, %c0_48] : memref<18x18x16xf32, #tpu.memory_space<vmem>>, vector<16x16x16xf32>
    %35 = vector.shape_cast %34 : vector<16x16x16xf32> to vector<256x16xf32>
    %36 = tpu.concatenate %19, %21, %23, %25, %27, %29, %31, %33, %35 in 1 : vector<256x16xf32>, vector<256x16xf32>, vector<256x16xf32>, vector<256x16xf32>, vector<256x16xf32>, vector<256x16xf32>, vector<256x16xf32>, vector<256x16xf32>, vector<256x16xf32> -> vector<256x144xf32>
    %c0_49 = arith.constant 0 : index
    %c0_50 = arith.constant 0 : index
    %37 = vector.load %arg3[%c0_49, %c0_50] : memref<144x16xf32, #tpu.memory_space<vmem>>, vector<144x16xf32>
    %cst_51 = arith.constant dense<0.000000e+00> : vector<256x16xf32>
    %38 = tpu.matmul %36, %37, %cst_51 {dimension_numbers = #tpu.dot_dimension_numbers<[1], [0], [0], [1], [0, 0, 1, 1], [], []>} : vector<256x144xf32>, vector<144x16xf32>, vector<256x16xf32> -> vector<256x16xf32>
    %c0_52 = arith.constant 0 : index
    %c0_53 = arith.constant 0 : index
    %39 = vector.load %arg6[%c0_52, %c0_53] : memref<1x16xf32, #tpu.memory_space<vmem>>, vector<1x16xf32>
    %40 = vector.broadcast %39 : vector<1x16xf32> to vector<256x16xf32>
    %41 = arith.addf %38, %40 : vector<256x16xf32>
    %cst_54 = arith.constant 0.000000e+00 : f32
    %42 = vector.broadcast %cst_54 : f32 to vector<256x16xf32>
    %43 = arith.maximumf %41, %42 : vector<256x16xf32>
    %c0_55 = arith.constant 0 : index
    %c0_56 = arith.constant 0 : index
    %44 = vector.load %arg4[%c0_55, %c0_56] : memref<16x64xf32, #tpu.memory_space<vmem>>, vector<16x64xf32>
    %cst_57 = arith.constant dense<0.000000e+00> : vector<256x64xf32>
    %45 = tpu.matmul %43, %44, %cst_57 {dimension_numbers = #tpu.dot_dimension_numbers<[1], [0], [0], [1], [0, 0, 1, 1], [], []>} : vector<256x16xf32>, vector<16x64xf32>, vector<256x64xf32> -> vector<256x64xf32>
    %c0_58 = arith.constant 0 : index
    %c0_59 = arith.constant 0 : index
    %46 = vector.load %arg7[%c0_58, %c0_59] : memref<1x64xf32, #tpu.memory_space<vmem>>, vector<1x64xf32>
    %47 = vector.broadcast %46 : vector<1x64xf32> to vector<256x64xf32>
    %48 = arith.addf %45, %47 : vector<256x64xf32>
    %49 = arith.addf %48, %2 : vector<256x64xf32>
    %cst_60 = arith.constant 0.000000e+00 : f32
    %50 = vector.broadcast %cst_60 : f32 to vector<256x64xf32>
    %51 = arith.maximumf %49, %50 : vector<256x64xf32>
    %52 = vector.shape_cast %51 : vector<256x64xf32> to vector<16x16x64xf32>
    %c0_61 = arith.constant 0 : index
    %c0_62 = arith.constant 0 : index
    %c0_63 = arith.constant 0 : index
    %c0_64 = arith.constant 0 : index
    %53 = vector.load %arg8[%c0_61, %c0_62, %c0_63, %c0_64] : memref<1x16x16x64xf32, #tpu.memory_space<vmem>>, vector<1x16x16x64xf32>
    %54 = vector.shape_cast %53 : vector<1x16x16x64xf32> to vector<16x16x64xf32>
    %55 = vector.shape_cast %52 : vector<16x16x64xf32> to vector<1x16x16x64xf32>
    tpu.vector_store %arg8[%c0_61, %c0_62, %c0_63, %c0_64], %55 {strides = array<i32>} : memref<1x16x16x64xf32, #tpu.memory_space<vmem>>, vector<1x16x16x64xf32>,
    return
  }
  func.func @transform_0(%arg0: i32) -> (i32, i32, i32, i32) {
    %c0_i32 = arith.constant 0 : i32
    %c0_i32_0 = arith.constant 0 : i32
    %c0_i32_1 = arith.constant 0 : i32
    %c0_i32_2 = arith.constant 0 : i32
    return %arg0, %c0_i32, %c0_i32_0, %c0_i32_1 : i32, i32, i32, i32
  }
  func.func @transform_1(%arg0: i32) -> (i32, i32) {
    %c0_i32 = arith.constant 0 : i32
    %c0_i32_0 = arith.constant 0 : i32
    %c0_i32_1 = arith.constant 0 : i32
    return %c0_i32, %c0_i32_0 : i32, i32
  }
  func.func @transform_2(%arg0: i32) -> (i32, i32) {
    %c0_i32 = arith.constant 0 : i32
    %c0_i32_0 = arith.constant 0 : i32
    %c0_i32_1 = arith.constant 0 : i32
    return %c0_i32, %c0_i32_0 : i32, i32
  }
  func.func @transform_3(%arg0: i32) -> (i32, i32) {
    %c0_i32 = arith.constant 0 : i32
    %c0_i32_0 = arith.constant 0 : i32
    %c0_i32_1 = arith.constant 0 : i32
    return %c0_i32, %c0_i32_0 : i32, i32
  }
  func.func @transform_4(%arg0: i32) -> (i32, i32) {
    %c0_i32 = arith.constant 0 : i32
    %c0_i32_0 = arith.constant 0 : i32
    %c0_i32_1 = arith.constant 0 : i32
    return %c0_i32, %c0_i32_0 : i32, i32
  }
  func.func @transform_5(%arg0: i32) -> (i32, i32) {
    %c0_i32 = arith.constant 0 : i32
    %c0_i32_0 = arith.constant 0 : i32
    %c0_i32_1 = arith.constant 0 : i32
    return %c0_i32, %c0_i32_0 : i32, i32
  }
  func.func @transform_6(%arg0: i32) -> (i32, i32) {
    %c0_i32 = arith.constant 0 : i32
    %c0_i32_0 = arith.constant 0 : i32
    %c0_i32_1 = arith.constant 0 : i32
    return %c0_i32, %c0_i32_0 : i32, i32
  }
  func.func @transform_7(%arg0: i32) -> (i32, i32, i32, i32) {
    %c0_i32 = arith.constant 0 : i32
    %c0_i32_0 = arith.constant 0 : i32
    %c0_i32_1 = arith.constant 0 : i32
    %c0_i32_2 = arith.constant 0 : i32
    return %arg0, %c0_i32, %c0_i32_0, %c0_i32_1 : i32, i32, i32, i32
  }
}

</mosaic_0001>

<llo_original>
// kernel: bottleneck_forward.1
$region0: #{bottleneck_forward.1}
  #allocation0 [shape = 'u32[]', space=smem, size = 0x4, offset = 0x4, fixed_abs, tag = 'smem constant byte address 0x4 - core index']
  #allocation1 [shape = 'u32[144,128]{1,0:T(1,128)}', space=vmem, size = 0x12000, scoped, tag = 'internal scratch']
  #allocation2 [shape = 'f32[18,18,16]{2,1,0:T(8,128)}', space=vmem, size = 0x36000, scoped, tag = 'scratch operand']
  %s0 = inlined_call_operand.vmem [shape: f32[2,16,16,64], index: 0, kind: input, shape index: {}]
  %s1 = inlined_call_operand.vmem [shape: f32[64,16], index: 1, kind: input, shape index: {}]
  %s2 = inlined_call_operand.vmem [shape: f32[144,16], index: 2, kind: input, shape index: {}]
  %s3 = inlined_call_operand.vmem [shape: f32[16,64], index: 3, kind: input, shape index: {}]
  %s4 = inlined_call_operand.vmem [shape: f32[1,16], index: 4, kind: input, shape index: {}]
  %s5 = inlined_call_operand.vmem [shape: f32[1,16], index: 5, kind: input, shape index: {}]
  %s6 = inlined_call_operand.vmem [shape: f32[1,64], index: 6, kind: input, shape index: {}]
  %s7 = inlined_call_operand.hbm [shape: f32[2,16,16,64], index: 7, kind: output, shape index: {}]
  %s8 = sld [smem:[#allocation0]]
  $region61: #{bottleneck_forward.1} parent=0
    _
  %s10 = ssub.s32 1, %s8
  %s11 = scalar_select 0, %s10, %s8
  $region1: #{bottleneck_forward.1} parent=0
    #allocation3 [shape = 'u8[262144]{0}', space=vmem, size = 0x40000, scoped, tag = 'output window, operand 0']
    #allocation4 [shape = 's32[2]{0}', space=sflag, size = 0x8, scoped, tag = 'scoped memory for bottleneck_forward.1']
    %12 = vsyncpa [#allocation4], 0
    %s13 = scalar_lea.sflag [#allocation4], 1
    %14 = vsyncpa %s13, 0
    loop: start=0, step=1, limit=4
    $region2: #{bottleneck_forward.1} parent=1 // loop_pre_header
      _
    $region3: #{bottleneck_forward.1} parent=1 // loop_header
      %s16 = sphi 0, %s20
      %p17 = scmp.ge.s32.totalorder %s16, 4
      %s26 = sphi 0, %s28
      %s29 = sphi 0, %s26
      %s30 = sphi 0, %s29
      %s46 = sphi 0, %s30
      %s50 = sphi 0, %s50
      %s52 = sphi 0, %s50
      %s53 = sphi 0, %s52
      %s67 = sphi 0, %s53
      %s71 = sphi 0, %s71
      %s73 = sphi 0, %s71
      %s74 = sphi 0, %s73
      %s88 = sphi 0, %s74
      %s92 = sphi 0, %s92
      %s94 = sphi 0, %s92
      %s95 = sphi 0, %s94
      %s109 = sphi 0, %s95
      %s113 = sphi 0, %s113
      %s115 = sphi 0, %s113
      %s116 = sphi 0, %s115
      %s130 = sphi 0, %s116
      %s134 = sphi 0, %s134
      %s136 = sphi 0, %s134
      %s137 = sphi 0, %s136
      %s151 = sphi 0, %s137
      %s155 = sphi 0, %s155
      %s157 = sphi 0, %s155
      %s158 = sphi 0, %s157
      %s172 = sphi 0, %s158
      %s178 = sphi 0, %s180
      %s181 = sphi 0, %s178
      %s182 = sphi 0, %s181
      %s198 = sphi 0, %s182
    $region4: #{bottleneck_forward.1} parent=1 // loop_header_branch
      %19 = sbr.rel (%p17) target = $region8
    $region5: #{bottleneck_forward.1} parent=1 // loop_body
      %s21 = ssub.s32 %s16, 1
      %s22 = ssub.s32 %s16, 2
      %s23 = sadd.s32 %s16, 1
      %s24 = ssub.s32 %s16, %s23
      %p25 = scmp.eq.s32.totalorder %s24, 0
      %s27 = sadd.s32 %s26, 1
      %s28 = scalar_select %p25, %s26, %s27
      %p31 = pneg %p25
      %p32 = scmp.eq.s32.totalorder %s16, 1
      %p33 = por %p31, %p32
      %p34 = scmp.ne.s32.totalorder %s26, %s29
      %p35 = scmp.eq.s32.totalorder %s16, 0
      %p36 = por %p34, %p35
      %p37 = scmp.ne.s32.totalorder %s26, %s29
      %p38 = scmp.eq.s32.totalorder %s21, 1
      %p39 = por %p37, %p38
      %p40 = scmp.ne.s32.totalorder %s29, %s30
      %p41 = scmp.eq.s32.totalorder %s21, 0
      %p42 = por %p40, %p41
      %p43 = scmp.ne.s32.totalorder %s29, %s30
      %p44 = scmp.eq.s32.totalorder %s22, 1
      %p45 = por %p43, %p44
      %p47 = scmp.ne.s32.totalorder %s30, %s46
      %p48 = scmp.eq.s32.totalorder %s22, 0
      %p49 = por %p47, %p48
      %s51 = sadd.s32 %s50, 1
      %p54 = scmp.eq.s32.totalorder %s16, 1
      %p55 = scmp.ne.s32.totalorder %s50, %s52
      %p56 = scmp.eq.s32.totalorder %s16, 0
      %p57 = por %p55, %p56
      %p58 = scmp.ne.s32.totalorder %s50, %s52
      %p59 = scmp.eq.s32.totalorder %s21, 1
      %p60 = por %p58, %p59
      %p61 = scmp.ne.s32.totalorder %s52, %s53
      %p62 = scmp.eq.s32.totalorder %s21, 0
      %p63 = por %p61, %p62
      %p64 = scmp.ne.s32.totalorder %s52, %s53
      %p65 = scmp.eq.s32.totalorder %s22, 1
      %p66 = por %p64, %p65
      %p68 = scmp.ne.s32.totalorder %s53, %s67
      %p69 = scmp.eq.s32.totalorder %s22, 0
      %p70 = por %p68, %p69
      %s72 = sadd.s32 %s71, 1
      %p75 = scmp.eq.s32.totalorder %s16, 1
      %p76 = scmp.ne.s32.totalorder %s71, %s73
      %p77 = scmp.eq.s32.totalorder %s16, 0
      %p78 = por %p76, %p77
      %p79 = scmp.ne.s32.totalorder %s71, %s73
      %p80 = scmp.eq.s32.totalorder %s21, 1
      %p81 = por %p79, %p80
      %p82 = scmp.ne.s32.totalorder %s73, %s74
      %p83 = scmp.eq.s32.totalorder %s21, 0
      %p84 = por %p82, %p83
      %p85 = scmp.ne.s32.totalorder %s73, %s74
      %p86 = scmp.eq.s32.totalorder %s22, 1
      %p87 = por %p85, %p86
      %p89 = scmp.ne.s32.totalorder %s74, %s88
      %p90 = scmp.eq.s32.totalorder %s22, 0
      %p91 = por %p89, %p90
      %s93 = sadd.s32 %s92, 1
      %p96 = scmp.eq.s32.totalorder %s16, 1
      %p97 = scmp.ne.s32.totalorder %s92, %s94
      %p98 = scmp.eq.s32.totalorder %s16, 0
      %p99 = por %p97, %p98
      %p100 = scmp.ne.s32.totalorder %s92, %s94
      %p101 = scmp.eq.s32.totalorder %s21, 1
      %p102 = por %p100, %p101
      %p103 = scmp.ne.s32.totalorder %s94, %s95
      %p104 = scmp.eq.s32.totalorder %s21, 0
      %p105 = por %p103, %p104
      %p106 = scmp.ne.s32.totalorder %s94, %s95
      %p107 = scmp.eq.s32.totalorder %s22, 1
      %p108 = por %p106, %p107
      %p110 = scmp.ne.s32.totalorder %s95, %s109
      %p111 = scmp.eq.s32.totalorder %s22, 0
      %p112 = por %p110, %p111
      %s114 = sadd.s32 %s113, 1
      %p117 = scmp.eq.s32.totalorder %s16, 1
      %p118 = scmp.ne.s32.totalorder %s113, %s115
      %p119 = scmp.eq.s32.totalorder %s16, 0
      %p120 = por %p118, %p119
      %p121 = scmp.ne.s32.totalorder %s113, %s115
      %p122 = scmp.eq.s32.totalorder %s21, 1
      %p123 = por %p121, %p122
      %p124 = scmp.ne.s32.totalorder %s115, %s116
      %p125 = scmp.eq.s32.totalorder %s21, 0
      %p126 = por %p124, %p125
      %p127 = scmp.ne.s32.totalorder %s115, %s116
      %p128 = scmp.eq.s32.totalorder %s22, 1
      %p129 = por %p127, %p128
      %p131 = scmp.ne.s32.totalorder %s116, %s130
      %p132 = scmp.eq.s32.totalorder %s22, 0
      %p133 = por %p131, %p132
      %s135 = sadd.s32 %s134, 1
      %p138 = scmp.eq.s32.totalorder %s16, 1
      %p139 = scmp.ne.s32.totalorder %s134, %s136
      %p140 = scmp.eq.s32.totalorder %s16, 0
      %p141 = por %p139, %p140
      %p142 = scmp.ne.s32.totalorder %s134, %s136
      %p143 = scmp.eq.s32.totalorder %s21, 1
      %p144 = por %p142, %p143
      %p145 = scmp.ne.s32.totalorder %s136, %s137
      %p146 = scmp.eq.s32.totalorder %s21, 0
      %p147 = por %p145, %p146
      %p148 = scmp.ne.s32.totalorder %s136, %s137
      %p149 = scmp.eq.s32.totalorder %s22, 1
      %p150 = por %p148, %p149
      %p152 = scmp.ne.s32.totalorder %s137, %s151
      %p153 = scmp.eq.s32.totalorder %s22, 0
      %p154 = por %p152, %p153
      %s156 = sadd.s32 %s155, 1
      %p159 = scmp.eq.s32.totalorder %s16, 1
      %p160 = scmp.ne.s32.totalorder %s155, %s157
      %p161 = scmp.eq.s32.totalorder %s16, 0
      %p162 = por %p160, %p161
      %p163 = scmp.ne.s32.totalorder %s155, %s157
      %p164 = scmp.eq.s32.totalorder %s21, 1
      %p165 = por %p163, %p164
      %p166 = scmp.ne.s32.totalorder %s157, %s158
      %p167 = scmp.eq.s32.totalorder %s21, 0
      %p168 = por %p166, %p167
      %p169 = scmp.ne.s32.totalorder %s157, %s158
      %p170 = scmp.eq.s32.totalorder %s22, 1
      %p171 = por %p169, %p170
      %p173 = scmp.ne.s32.totalorder %s158, %s172
      %p174 = scmp.eq.s32.totalorder %s22, 0
      %p175 = por %p173, %p174
      %s176 = ssub.s32 %s16, %s23
      %p177 = scmp.eq.s32.totalorder %s176, 0
      %s179 = sadd.s32 %s178, 1
      %s180 = scalar_select %p177, %s178, %s179
      %p183 = pneg %p177
      %p184 = scmp.eq.s32.totalorder %s16, 1
      %p185 = por %p183, %p184
      %p186 = scmp.ne.s32.totalorder %s178, %s181
      %p187 = scmp.eq.s32.totalorder %s16, 0
      %p188 = por %p186, %p187
      %p189 = scmp.ne.s32.totalorder %s178, %s181
      %p190 = scmp.eq.s32.totalorder %s21, 1
      %p191 = por %p189, %p190
      %p192 = scmp.ne.s32.totalorder %s181, %s182
      %p193 = scmp.eq.s32.totalorder %s21, 0
      %p194 = por %p192, %p193
      %p195 = scmp.ne.s32.totalorder %s181, %s182
      %p196 = scmp.eq.s32.totalorder %s22, 1
      %p197 = por %p195, %p196
      %p199 = scmp.ne.s32.totalorder %s182, %s198
      %p200 = scmp.eq.s32.totalorder %s22, 0
      %p201 = por %p199, %p200
      %p202 = scmp.le.s32.totalorder 1, %s16
      %p203 = scmp.lt.s32.totalorder %s16, 3
      %p204 = pnand %p202, %p203
      %p205 = pneg %p204
      // Predicated region
      $region9: #{bottleneck_forward.1} parent=5 // pred_check
        _
      $region10: #{bottleneck_forward.1} parent=5 // pred_check_branch
        %207 = sbr.rel (%p204) target = $region12
      $region11: #{bottleneck_forward.1} parent=5 // pred_region
        %s208 = ssub.s32 %s16, 1
        // Predicated region
        $region13: #{bottleneck_forward.1} parent=11 // pred_check
          %p209 = pneg %p63
        $region14: #{bottleneck_forward.1} parent=11 // pred_check_branch
          %211 = sbr.rel (%p209) target = $region16
        $region15: #{bottleneck_forward.1} parent=11 // pred_region
          _
        $region16: #{bottleneck_forward.1} parent=11 // pred_fallthru
          _
        // Predicated region
        $region17: #{bottleneck_forward.1} parent=11 // pred_check
          %p212 = pneg %p84
        $region18: #{bottleneck_forward.1} parent=11 // pred_check_branch
          %214 = sbr.rel (%p212) target = $region20
        $region19: #{bottleneck_forward.1} parent=11 // pred_region
          _
        $region20: #{bottleneck_forward.1} parent=11 // pred_fallthru
          _
        // Predicated region
        $region21: #{bottleneck_forward.1} parent=11 // pred_check
          %p215 = pneg %p105
        $region22: #{bottleneck_forward.1} parent=11 // pred_check_branch
          %217 = sbr.rel (%p215) target = $region24
        $region23: #{bottleneck_forward.1} parent=11 // pred_region
          _
        $region24: #{bottleneck_forward.1} parent=11 // pred_fallthru
          _
        // Predicated region
        $region25: #{bottleneck_forward.1} parent=11 // pred_check
          %p218 = pneg %p126
        $region26: #{bottleneck_forward.1} parent=11 // pred_check_branch
          %220 = sbr.rel (%p218) target = $region28
        $region27: #{bottleneck_forward.1} parent=11 // pred_region
          _
        $region28: #{bottleneck_forward.1} parent=11 // pred_fallthru
          _
        // Predicated region
        $region29: #{bottleneck_forward.1} parent=11 // pred_check
          %p221 = pneg %p147
        $region30: #{bottleneck_forward.1} parent=11 // pred_check_branch
          %223 = sbr.rel (%p221) target = $region32
        $region31: #{bottleneck_forward.1} parent=11 // pred_region
          _
        $region32: #{bottleneck_forward.1} parent=11 // pred_fallthru
          _
        // Predicated region
        $region33: #{bottleneck_forward.1} parent=11 // pred_check
          %p224 = pneg %p168
        $region34: #{bottleneck_forward.1} parent=11 // pred_check_branch
          %226 = sbr.rel (%p224) target = $region36
        $region35: #{bottleneck_forward.1} parent=11 // pred_region
          _
        $region36: #{bottleneck_forward.1} parent=11 // pred_fallthru
          _
      $region12: #{bottleneck_forward.1} parent=5 // pred_fallthru
        _
      %p227 = scmp.lt.s32.totalorder %s16, 2
      // Predicated region
      $region37: #{bottleneck_forward.1} parent=5 // pred_check
        %p228 = pneg %p227
      $region38: #{bottleneck_forward.1} parent=5 // pred_check_branch
        %230 = sbr.rel (%p228) target = $region40
      $region39: #{bottleneck_forward.1} parent=5 // pred_region
        // Predicated region
        $region41: #{bottleneck_forward.1} parent=39 // pred_check
          %p231 = pneg %p36
        $region42: #{bottleneck_forward.1} parent=39 // pred_check_branch
          %233 = sbr.rel (%p231) target = $region44
        $region43: #{bottleneck_forward.1} parent=39 // pred_region
          %p234 = scmp.lt.s32.totalorder %s16, 1
          %s235 = scalar_select %p234, %s16, 1
          %s236 = smul.addr %s235, 32
          %s237 = smul.addr %s236, 8
          %s238 = scalar_lea.vmem %s0, %s237
        $region44: #{bottleneck_forward.1} parent=39 // pred_fallthru
          _
      $region40: #{bottleneck_forward.1} parent=5 // pred_fallthru
        _
      %p239 = scmp.le.s32.totalorder 1, %s16
      %p240 = scmp.lt.s32.totalorder %s16, 3
      %p241 = pnand %p239, %p240
      %p242 = pneg %p241
      // Predicated region
      $region45: #{bottleneck_forward.1} parent=5 // pred_check
        _
      $region46: #{bottleneck_forward.1} parent=5 // pred_check_branch
        %244 = sbr.rel (%p241) target = $region48
      $region47: #{bottleneck_forward.1} parent=5 // pred_region
        %s245 = ssub.s32 %s16, 1
        %p246 = scmp.lt.s32.totalorder %s21, 1
        %s247 = scalar_select %p246, %s21, 1
        %s248 = smul.addr %s247, 32
        %s249 = smul.addr %s248, 8
        %s250 = scalar_lea.vmem %s0, %s249
        %p251 = pneg %p42
        %p252 = pneg %p39
        %p253 = pneg %p63
        %p254 = pneg %p60
        %p255 = pneg %p84
        %p256 = pneg %p81
        %p257 = pneg %p105
        %p258 = pneg %p102
        %p259 = pneg %p126
        %p260 = pneg %p123
        %p261 = pneg %p147
        %p262 = pneg %p144
        %p263 = pneg %p168
        %p264 = pneg %p165
        %p265 = pneg %p194
        %p266 = pneg %p191
        %s267 = sand.u32 %s181, 1
        %s268 = scalar_lea.sflag [#allocation4], %s267
        %s269 = sand.u32 %s181, 1
        %s270 = smul.addr %s269, 256
        %s271 = scalar_lea.vmem [#allocation3], %s270
        %p272 = scmp.lt.s32.totalorder %s21, 1
        %s273 = scalar_select %p272, %s21, 1
        %s274 = smul.addr %s273, 32
        %s275 = smul.addr %s274, 8
        %s276 = scalar_lea.vmem %s0, %s275
        %v277 = vld [vmem:[%s276] sm:$0xff]
        %v278 = vld [vmem:[%s276 + $0x8] sm:$0xff]
        %v279 = vld [vmem:[%s276 + $0x10] sm:$0xff]
        %v280 = vld [vmem:[%s276 + $0x18] sm:$0xff]
        %v281 = vld [vmem:[%s276 + $0x20] sm:$0xff]
        %v282 = vld [vmem:[%s276 + $0x28] sm:$0xff]
        %v283 = vld [vmem:[%s276 + $0x30] sm:$0xff]
        %v284 = vld [vmem:[%s276 + $0x38] sm:$0xff]
        %v285 = vld [vmem:[%s276 + $0x40] sm:$0xff]
        %v286 = vld [vmem:[%s276 + $0x48] sm:$0xff]
        %v287 = vld [vmem:[%s276 + $0x50] sm:$0xff]
        %v288 = vld [vmem:[%s276 + $0x58] sm:$0xff]
        %v289 = vld [vmem:[%s276 + $0x60] sm:$0xff]
        %v290 = vld [vmem:[%s276 + $0x68] sm:$0xff]
        %v291 = vld [vmem:[%s276 + $0x70] sm:$0xff]
        %v292 = vld [vmem:[%s276 + $0x78] sm:$0xff]
        %v293 = vld [vmem:[%s276 + $0x80] sm:$0xff]
        %v294 = vld [vmem:[%s276 + $0x88] sm:$0xff]
        %v295 = vld [vmem:[%s276 + $0x90] sm:$0xff]
        %v296 = vld [vmem:[%s276 + $0x98] sm:$0xff]
        %v297 = vld [vmem:[%s276 + $0xa0] sm:$0xff]
        %v298 = vld [vmem:[%s276 + $0xa8] sm:$0xff]
        %v299 = vld [vmem:[%s276 + $0xb0] sm:$0xff]
        %v300 = vld [vmem:[%s276 + $0xb8] sm:$0xff]
        %v301 = vld [vmem:[%s276 + $0xc0] sm:$0xff]
        %v302 = vld [vmem:[%s276 + $0xc8] sm:$0xff]
        %v303 = vld [vmem:[%s276 + $0xd0] sm:$0xff]
        %v304 = vld [vmem:[%s276 + $0xd8] sm:$0xff]
        %v305 = vld [vmem:[%s276 + $0xe0] sm:$0xff]
        %v306 = vld [vmem:[%s276 + $0xe8] sm:$0xff]
        %v307 = vld [vmem:[%s276 + $0xf0] sm:$0xff]
        %v308 = vld [vmem:[%s276 + $0xf8] sm:$0xff]
        %vm309 = vcmask 130048
        %310 = vst.msk [vmem:[#allocation2] sm:$0xff] %vm309, 0.0
        %311 = vst.msk [vmem:[#allocation2 + $0x8] sm:$0xff] %vm309, 0.0
        %vm312 = vcmask 123904
        %313 = vst.msk [vmem:[#allocation2 + $0x10] sm:$0x3] %vm312, 0.0
        %s314 = scalar_lea.vmem [#allocation2], 408
        %315 = vst.msk [vmem:[%s314] sm:$0xff] %vm309, 0.0
        %316 = vst.msk [vmem:[%s314 + $0x8] sm:$0xff] %vm309, 0.0
        %317 = vst.msk [vmem:[%s314 + $0x10] sm:$0x3] %vm312, 0.0
        %s318 = scalar_lea.vmem [#allocation2], 24
        %vm319 = vcmask 122880
        %320 = vst.msk [vmem:[%s318] sm:$0x1] %vm319, 0.0
        %321 = vst.msk [vmem:[%s318 + $0x18] sm:$0x1] %vm319, 0.0
        %322 = vst.msk [vmem:[%s318 + $0x30] sm:$0x1] %vm319, 0.0
        %323 = vst.msk [vmem:[%s318 + $0x48] sm:$0x1] %vm319, 0.0
        %324 = vst.msk [vmem:[%s318 + $0x60] sm:$0x1] %vm319, 0.0
        %325 = vst.msk [vmem:[%s318 + $0x78] sm:$0x1] %vm319, 0.0
        %326 = vst.msk [vmem:[%s318 + $0x90] sm:$0x1] %vm319, 0.0
        %327 = vst.msk [vmem:[%s318 + $0xa8] sm:$0x1] %vm319, 0.0
        %328 = vst.msk [vmem:[%s318 + $0xc0] sm:$0x1] %vm319, 0.0
        %329 = vst.msk [vmem:[%s318 + $0xd8] sm:$0x1] %vm319, 0.0
        %330 = vst.msk [vmem:[%s318 + $0xf0] sm:$0x1] %vm319, 0.0
        %331 = vst.msk [vmem:[%s318 + $0x108] sm:$0x1] %vm319, 0.0
        %332 = vst.msk [vmem:[%s318 + $0x120] sm:$0x1] %vm319, 0.0
        %333 = vst.msk [vmem:[%s318 + $0x138] sm:$0x1] %vm319, 0.0
        %334 = vst.msk [vmem:[%s318 + $0x150] sm:$0x1] %vm319, 0.0
        %335 = vst.msk [vmem:[%s318 + $0x168] sm:$0x1] %vm319, 0.0
        %336 = vst.msk [vmem:[%s318 + $0x11] sm:$0x1] %vm319, 0.0
        %337 = vst.msk [vmem:[%s318 + $0x29] sm:$0x1] %vm319, 0.0
        %338 = vst.msk [vmem:[%s318 + $0x41] sm:$0x1] %vm319, 0.0
        %339 = vst.msk [vmem:[%s318 + $0x59] sm:$0x1] %vm319, 0.0
        %340 = vst.msk [vmem:[%s318 + $0x71] sm:$0x1] %vm319, 0.0
        %341 = vst.msk [vmem:[%s318 + $0x89] sm:$0x1] %vm319, 0.0
        %342 = vst.msk [vmem:[%s318 + $0xa1] sm:$0x1] %vm319, 0.0
        %343 = vst.msk [vmem:[%s318 + $0xb9] sm:$0x1] %vm319, 0.0
        %344 = vst.msk [vmem:[%s318 + $0xd1] sm:$0x1] %vm319, 0.0
        %345 = vst.msk [vmem:[%s318 + $0xe9] sm:$0x1] %vm319, 0.0
        %346 = vst.msk [vmem:[%s318 + $0x101] sm:$0x1] %vm319, 0.0
        %347 = vst.msk [vmem:[%s318 + $0x119] sm:$0x1] %vm319, 0.0
        %348 = vst.msk [vmem:[%s318 + $0x131] sm:$0x1] %vm319, 0.0
        %349 = vst.msk [vmem:[%s318 + $0x149] sm:$0x1] %vm319, 0.0
        %350 = vst.msk [vmem:[%s318 + $0x161] sm:$0x1] %vm319, 0.0
        %351 = vst.msk [vmem:[%s318 + $0x179] sm:$0x1] %vm319, 0.0
        %v352 = vld [vmem:[%s1] sm:$0xff]
        %v353 = vld [vmem:[%s1 + $0x8] sm:$0xff]
        %v354 = vld [vmem:[%s1 + $0x10] sm:$0xff]
        %v355 = vld [vmem:[%s1 + $0x18] sm:$0xff]
        %v356 = vld [vmem:[%s1 + $0x20] sm:$0xff]
        %v357 = vld [vmem:[%s1 + $0x28] sm:$0xff]
        %v358 = vld [vmem:[%s1 + $0x30] sm:$0xff]
        %v359 = vld [vmem:[%s1 + $0x38] sm:$0xff]
        %v360 = vld [vmem:[%s4] sm:$0x1]
        %v362 = vlaneseq
        %v363 = vshrl.u32 %v362, 7
        %v364 = vsub.s32 0, %v363
        %v365 = vrot.slane %v360, %v364
        %vm367 = vcmask 523264
        %v369 = vsel %vm367, %v277, 0
        %v372 = vsel %vm367, %v278, 0
        %v375 = vsel %vm367, %v279, 0
        %v378 = vsel %vm367, %v280, 0
        %v381 = vsel %vm367, %v281, 0
        %v384 = vsel %vm367, %v282, 0
        %v387 = vsel %vm367, %v283, 0
        %v390 = vsel %vm367, %v284, 0
        %v393 = vsel %vm367, %v285, 0
        %v396 = vsel %vm367, %v286, 0
        %v399 = vsel %vm367, %v287, 0
        %v402 = vsel %vm367, %v288, 0
        %v405 = vsel %vm367, %v289, 0
        %v408 = vsel %vm367, %v290, 0
        %v411 = vsel %vm367, %v291, 0
        %v414 = vsel %vm367, %v292, 0
        %v417 = vsel %vm367, %v293, 0
        %v420 = vsel %vm367, %v294, 0
        %v423 = vsel %vm367, %v295, 0
        %v426 = vsel %vm367, %v296, 0
        %v429 = vsel %vm367, %v297, 0
        %v432 = vsel %vm367, %v298, 0
        %v435 = vsel %vm367, %v299, 0
        %v438 = vsel %vm367, %v300, 0
        %v441 = vsel %vm367, %v301, 0
        %v444 = vsel %vm367, %v302, 0
        %v447 = vsel %vm367, %v303, 0
        %v450 = vsel %vm367, %v304, 0
        %v453 = vsel %vm367, %v305, 0
        %v456 = vsel %vm367, %v306, 0
        %v459 = vsel %vm367, %v307, 0
        %v462 = vsel %vm367, %v308, 0
        %464 = vmatprep.subr.mxu0 0.0
        %465 = vmatpush1.msra.mxu0 %v352
        %466 = vmatprep.subr.mxu0 0.0
        %467 = vmatpush1.msra.mxu0 %v353
        %468 = vmatprep.subr.mxu0 0.0
        %469 = vmatpush1.msra.mxu0 %v354
        %470 = vmatprep.subr.mxu0 0.0
        %471 = vmatpush1.msra.mxu0 %v355
        %472 = vmatprep.subr.mxu0 0.0
        %473 = vmatpush1.msra.mxu0 %v356
        %474 = vmatprep.subr.mxu0 0.0
        %475 = vmatpush1.msra.mxu0 %v357
        %476 = vmatprep.subr.mxu0 0.0
        %477 = vmatpush1.msra.mxu0 %v358
        %478 = vmatprep.subr.mxu0 0.0
        %479 = vmatpush1.msra.mxu0 %v359
        %480 = vmatprep.subr.mxu0 0.0
        %481 = vmatpush1.msra.mxu0 0.0
        %482 = vmatprep.subr.mxu0 0.0
        %483 = vmatpush1.msra.mxu0 0.0
        %484 = vmatprep.subr.mxu0 0.0
        %485 = vmatpush1.msra.mxu0 0.0
        %486 = vmatprep.subr.mxu0 0.0
        %487 = vmatpush1.msra.mxu0 0.0
        %488 = vmatprep.subr.mxu0 0.0
        %489 = vmatpush1.msra.mxu0 0.0
        %490 = vmatprep.subr.mxu0 0.0
        %491 = vmatpush1.msra.mxu0 0.0
        %492 = vmatprep.subr.mxu0 0.0
        %493 = vmatpush1.msra.mxu0 0.0
        %494 = vmatprep.subr.mxu0 0.0
        %495 = vmatpush1.msra.mxu0 0.0
        %496 = vmatprep.subr.mxu0 0.0
        %497 = vmatpush1.msra.mxu0 0.0
        %498 = vmatprep.subr.mxu0 0.0
        %499 = vmatpush1.msra.mxu0 0.0
        %500 = vmatprep.subr.mxu0 0.0
        %501 = vmatpush1.msra.mxu0 0.0
        %502 = vmatprep.subr.mxu0 0.0
        %503 = vmatpush1.msra.mxu0 0.0
        %504 = vmatprep.subr.mxu0 0.0
        %505 = vmatpush1.msra.mxu0 0.0
        %506 = vmatprep.subr.mxu0 0.0
        %507 = vmatpush1.msra.mxu0 0.0
        %508 = vmatprep.subr.mxu0 0.0
        %509 = vmatpush1.msra.mxu0 0.0
        %510 = vmatprep.subr.mxu0 0.0
        %511 = vmatpush1.msra.mxu0 0.0
        %512 = vmatprep.subr.mxu0 0.0
        %513 = vmatpush1.msra.mxu0 0.0
        %514 = vmatprep.subr.mxu0 0.0
        %515 = vmatpush1.msra.mxu0 0.0
        %516 = vmatprep.subr.mxu0 0.0
        %517 = vmatpush1.msra.mxu0 0.0
        %518 = vmatprep.subr.mxu0 0.0
        %519 = vmatpush1.msra.mxu0 0.0
        %520 = vmatprep.subr.mxu0 0.0
        %521 = vmatpush1.msra.mxu0 0.0
        %522 = vmatprep.subr.mxu0 0.0
        %523 = vmatpush1.msra.mxu0 0.0
        %524 = vmatprep.subr.mxu0 0.0
        %525 = vmatpush1.msra.mxu0 0.0
        %526 = vmatprep.subr.mxu0 0.0
        %527 = vmatpush1.msra.mxu0 0.0
        %528 = vmatprep.mubr.f32.mxu0 0.0
        %529 = vmatmul.mubr.f32.gmra.mrb[0].mxu0 %v369
        %v530 = vpop.f32.mrb[0].mxu0
        %v531 = vadd.f32 %v365, %v530
        %v532 = vpop.f32.mrb[0].mxu0
        %533 = vmatprep.mubr.f32.mxu0 0.0
        %534 = vmatmul.mubr.f32.gmra.mrb[0].mxu0 %v372
        %v535 = vpop.f32.mrb[0].mxu0
        %v536 = vadd.f32 %v365, %v535
        %v537 = vpop.f32.mrb[0].mxu0
        %538 = vmatprep.mubr.f32.mxu0 0.0
        %539 = vmatmul.mubr.f32.gmra.mrb[0].mxu0 %v375
        %v540 = vpop.f32.mrb[0].mxu0
        %v541 = vadd.f32 %v365, %v540
        %v542 = vpop.f32.mrb[0].mxu0
        %543 = vmatprep.mubr.f32.mxu0 0.0
        %544 = vmatmul.mubr.f32.gmra.mrb[0].mxu0 %v378
        %v545 = vpop.f32.mrb[0].mxu0
        %v546 = vadd.f32 %v365, %v545
        %v547 = vpop.f32.mrb[0].mxu0
        %548 = vmatprep.mubr.f32.mxu0 0.0
        %549 = vmatmul.mubr.f32.gmra.mrb[0].mxu0 %v381
        %v550 = vpop.f32.mrb[0].mxu0
        %v551 = vadd.f32 %v365, %v550
        %v552 = vpop.f32.mrb[0].mxu0
        %553 = vmatprep.mubr.f32.mxu0 0.0
        %554 = vmatmul.mubr.f32.gmra.mrb[0].mxu0 %v384
        %v555 = vpop.f32.mrb[0].mxu0
        %v556 = vadd.f32 %v365, %v555
        %v557 = vpop.f32.mrb[0].mxu0
        %558 = vmatprep.mubr.f32.mxu0 0.0
        %559 = vmatmul.mubr.f32.gmra.mrb[0].mxu0 %v387
        %v560 = vpop.f32.mrb[0].mxu0
        %v561 = vadd.f32 %v365, %v560
        %v562 = vpop.f32.mrb[0].mxu0
        %563 = vmatprep.mubr.f32.mxu0 0.0
        %564 = vmatmul.mubr.f32.gmra.mrb[0].mxu0 %v390
        %v565 = vpop.f32.mrb[0].mxu0
        %v566 = vadd.f32 %v365, %v565
        %v567 = vpop.f32.mrb[0].mxu0
        %568 = vmatprep.mubr.f32.mxu0 0.0
        %569 = vmatmul.mubr.f32.gmra.mrb[0].mxu0 %v393
        %v570 = vpop.f32.mrb[0].mxu0
        %v571 = vadd.f32 %v365, %v570
        %v572 = vpop.f32.mrb[0].mxu0
        %573 = vmatprep.mubr.f32.mxu0 0.0
        %574 = vmatmul.mubr.f32.gmra.mrb[0].mxu0 %v396
        %v575 = vpop.f32.mrb[0].mxu0
        %v576 = vadd.f32 %v365, %v575
        %v577 = vpop.f32.mrb[0].mxu0
        %578 = vmatprep.mubr.f32.mxu0 0.0
        %579 = vmatmul.mubr.f32.gmra.mrb[0].mxu0 %v399
        %v580 = vpop.f32.mrb[0].mxu0
        %v581 = vadd.f32 %v365, %v580
        %v582 = vpop.f32.mrb[0].mxu0
        %583 = vmatprep.mubr.f32.mxu0 0.0
        %584 = vmatmul.mubr.f32.gmra.mrb[0].mxu0 %v402
        %v585 = vpop.f32.mrb[0].mxu0
        %v586 = vadd.f32 %v365, %v585
        %v587 = vpop.f32.mrb[0].mxu0
        %588 = vmatprep.mubr.f32.mxu0 0.0
        %589 = vmatmul.mubr.f32.gmra.mrb[0].mxu0 %v405
        %v590 = vpop.f32.mrb[0].mxu0
        %v591 = vadd.f32 %v365, %v590
        %v592 = vpop.f32.mrb[0].mxu0
        %593 = vmatprep.mubr.f32.mxu0 0.0
        %594 = vmatmul.mubr.f32.gmra.mrb[0].mxu0 %v408
        %v595 = vpop.f32.mrb[0].mxu0
        %v596 = vadd.f32 %v365, %v595
        %v597 = vpop.f32.mrb[0].mxu0
        %598 = vmatprep.mubr.f32.mxu0 0.0
        %599 = vmatmul.mubr.f32.gmra.mrb[0].mxu0 %v411
        %v600 = vpop.f32.mrb[0].mxu0
        %v601 = vadd.f32 %v365, %v600
        %v602 = vpop.f32.mrb[0].mxu0
        %603 = vmatprep.mubr.f32.mxu0 0.0
        %604 = vmatmul.mubr.f32.gmra.mrb[0].mxu0 %v414
        %v605 = vpop.f32.mrb[0].mxu0
        %v606 = vadd.f32 %v365, %v605
        %v607 = vpop.f32.mrb[0].mxu0
        %608 = vmatprep.mubr.f32.mxu0 0.0
        %609 = vmatmul.mubr.f32.gmra.mrb[0].mxu0 %v417
        %v610 = vpop.f32.mrb[0].mxu0
        %v611 = vadd.f32 %v365, %v610
        %v612 = vpop.f32.mrb[0].mxu0
        %613 = vmatprep.mubr.f32.mxu0 0.0
        %614 = vmatmul.mubr.f32.gmra.mrb[0].mxu0 %v420
        %v615 = vpop.f32.mrb[0].mxu0
        %v616 = vadd.f32 %v365, %v615
        %v617 = vpop.f32.mrb[0].mxu0
        %618 = vmatprep.mubr.f32.mxu0 0.0
        %619 = vmatmul.mubr.f32.gmra.mrb[0].mxu0 %v423
        %v620 = vpop.f32.mrb[0].mxu0
        %v621 = vadd.f32 %v365, %v620
        %v622 = vpop.f32.mrb[0].mxu0
        %623 = vmatprep.mubr.f32.mxu0 0.0
        %624 = vmatmul.mubr.f32.gmra.mrb[0].mxu0 %v426
        %v625 = vpop.f32.mrb[0].mxu0
        %v626 = vadd.f32 %v365, %v625
        %v627 = vpop.f32.mrb[0].mxu0
        %628 = vmatprep.mubr.f32.mxu0 0.0
        %629 = vmatmul.mubr.f32.gmra.mrb[0].mxu0 %v429
        %v630 = vpop.f32.mrb[0].mxu0
        %v631 = vadd.f32 %v365, %v630
        %v632 = vpop.f32.mrb[0].mxu0
        %633 = vmatprep.mubr.f32.mxu0 0.0
        %634 = vmatmul.mubr.f32.gmra.mrb[0].mxu0 %v432
        %v635 = vpop.f32.mrb[0].mxu0
        %v636 = vadd.f32 %v365, %v635
        %v637 = vpop.f32.mrb[0].mxu0
        %638 = vmatprep.mubr.f32.mxu0 0.0
        %639 = vmatmul.mubr.f32.gmra.mrb[0].mxu0 %v435
        %v640 = vpop.f32.mrb[0].mxu0
        %v641 = vadd.f32 %v365, %v640
        %v642 = vpop.f32.mrb[0].mxu0
        %643 = vmatprep.mubr.f32.mxu0 0.0
        %644 = vmatmul.mubr.f32.gmra.mrb[0].mxu0 %v438
        %v645 = vpop.f32.mrb[0].mxu0
        %v646 = vadd.f32 %v365, %v645
        %v647 = vpop.f32.mrb[0].mxu0
        %648 = vmatprep.mubr.f32.mxu0 0.0
        %649 = vmatmul.mubr.f32.gmra.mrb[0].mxu0 %v441
        %v650 = vpop.f32.mrb[0].mxu0
        %v651 = vadd.f32 %v365, %v650
        %v652 = vpop.f32.mrb[0].mxu0
        %653 = vmatprep.mubr.f32.mxu0 0.0
        %654 = vmatmul.mubr.f32.gmra.mrb[0].mxu0 %v444
        %v655 = vpop.f32.mrb[0].mxu0
        %v656 = vadd.f32 %v365, %v655
        %v657 = vpop.f32.mrb[0].mxu0
        %658 = vmatprep.mubr.f32.mxu0 0.0
        %659 = vmatmul.mubr.f32.gmra.mrb[0].mxu0 %v447
        %v660 = vpop.f32.mrb[0].mxu0
        %v661 = vadd.f32 %v365, %v660
        %v662 = vpop.f32.mrb[0].mxu0
        %663 = vmatprep.mubr.f32.mxu0 0.0
        %664 = vmatmul.mubr.f32.gmra.mrb[0].mxu0 %v450
        %v665 = vpop.f32.mrb[0].mxu0
        %v666 = vadd.f32 %v365, %v665
        %v667 = vpop.f32.mrb[0].mxu0
        %668 = vmatprep.mubr.f32.mxu0 0.0
        %669 = vmatmul.mubr.f32.gmra.mrb[0].mxu0 %v453
        %v670 = vpop.f32.mrb[0].mxu0
        %v671 = vadd.f32 %v365, %v670
        %v672 = vpop.f32.mrb[0].mxu0
        %673 = vmatprep.mubr.f32.mxu0 0.0
        %674 = vmatmul.mubr.f32.gmra.mrb[0].mxu0 %v456
        %v675 = vpop.f32.mrb[0].mxu0
        %v676 = vadd.f32 %v365, %v675
        %v677 = vpop.f32.mrb[0].mxu0
        %678 = vmatprep.mubr.f32.mxu0 0.0
        %679 = vmatmul.mubr.f32.gmra.mrb[0].mxu0 %v459
        %v680 = vpop.f32.mrb[0].mxu0
        %v681 = vadd.f32 %v365, %v680
        %v682 = vpop.f32.mrb[0].mxu0
        %683 = vmatprep.mubr.f32.mxu0 0.0
        %684 = vmatmul.mubr.f32.gmra.mrb[0].mxu0 %v462
        %v685 = vpop.f32.mrb[0].mxu0
        %v686 = vadd.f32 %v365, %v685
        %v687 = vpop.f32.mrb[0].mxu0
        %688 = vdwg.mxu0
        %v689 = vmax.f32 %v531, 0.0
        %v690 = vmax.f32 %v536, 0.0
        %v691 = vmax.f32 %v541, 0.0
        %v692 = vmax.f32 %v546, 0.0
        %v693 = vmax.f32 %v551, 0.0
        %v694 = vmax.f32 %v556, 0.0
        %v695 = vmax.f32 %v561, 0.0
        %v696 = vmax.f32 %v566, 0.0
        %v697 = vmax.f32 %v571, 0.0
        %v698 = vmax.f32 %v576, 0.0
        %v699 = vmax.f32 %v581, 0.0
        %v700 = vmax.f32 %v586, 0.0
        %v701 = vmax.f32 %v591, 0.0
        %v702 = vmax.f32 %v596, 0.0
        %v703 = vmax.f32 %v601, 0.0
        %v704 = vmax.f32 %v606, 0.0
        %v705 = vmax.f32 %v611, 0.0
        %v706 = vmax.f32 %v616, 0.0
        %v707 = vmax.f32 %v621, 0.0
        %v708 = vmax.f32 %v626, 0.0
        %v709 = vmax.f32 %v631, 0.0
        %v710 = vmax.f32 %v636, 0.0
        %v711 = vmax.f32 %v641, 0.0
        %v712 = vmax.f32 %v646, 0.0
        %v713 = vmax.f32 %v651, 0.0
        %v714 = vmax.f32 %v656, 0.0
        %v715 = vmax.f32 %v661, 0.0
        %v716 = vmax.f32 %v666, 0.0
        %v717 = vmax.f32 %v671, 0.0
        %v718 = vmax.f32 %v676, 0.0
        %v719 = vmax.f32 %v681, 0.0
        %v720 = vmax.f32 %v686, 0.0
        %721 = vst.msk [vmem:[%s318 + $0x1] sm:$0xff] %vm309, %v689
        %722 = vst.msk [vmem:[%s318 + $0x9] sm:$0xff] %vm309, %v690
        %723 = vst.msk [vmem:[%s318 + $0x19] sm:$0xff] %vm309, %v691
        %724 = vst.msk [vmem:[%s318 + $0x21] sm:$0xff] %vm309, %v692
        %725 = vst.msk [vmem:[%s318 + $0x31] sm:$0xff] %vm309, %v693
        %726 = vst.msk [vmem:[%s318 + $0x39] sm:$0xff] %vm309, %v694
        %727 = vst.msk [vmem:[%s318 + $0x49] sm:$0xff] %vm309, %v695
        %728 = vst.msk [vmem:[%s318 + $0x51] sm:$0xff] %vm309, %v696
        %729 = vst.msk [vmem:[%s318 + $0x61] sm:$0xff] %vm309, %v697
        %730 = vst.msk [vmem:[%s318 + $0x69] sm:$0xff] %vm309, %v698
        %731 = vst.msk [vmem:[%s318 + $0x79] sm:$0xff] %vm309, %v699
        %732 = vst.msk [vmem:[%s318 + $0x81] sm:$0xff] %vm309, %v700
        %733 = vst.msk [vmem:[%s318 + $0x91] sm:$0xff] %vm309, %v701
        %734 = vst.msk [vmem:[%s318 + $0x99] sm:$0xff] %vm309, %v702
        %735 = vst.msk [vmem:[%s318 + $0xa9] sm:$0xff] %vm309, %v703
        %736 = vst.msk [vmem:[%s318 + $0xb1] sm:$0xff] %vm309, %v704
        %737 = vst.msk [vmem:[%s318 + $0xc1] sm:$0xff] %vm309, %v705
        %738 = vst.msk [vmem:[%s318 + $0xc9] sm:$0xff] %vm309, %v706
        %739 = vst.msk [vmem:[%s318 + $0xd9] sm:$0xff] %vm309, %v707
        %740 = vst.msk [vmem:[%s318 + $0xe1] sm:$0xff] %vm309, %v708
        %741 = vst.msk [vmem:[%s318 + $0xf1] sm:$0xff] %vm309, %v709
        %742 = vst.msk [vmem:[%s318 + $0xf9] sm:$0xff] %vm309, %v710
        %743 = vst.msk [vmem:[%s318 + $0x109] sm:$0xff] %vm309, %v711
        %744 = vst.msk [vmem:[%s318 + $0x111] sm:$0xff] %vm309, %v712
        %745 = vst.msk [vmem:[%s318 + $0x121] sm:$0xff] %vm309, %v713
        %746 = vst.msk [vmem:[%s318 + $0x129] sm:$0xff] %vm309, %v714
        %747 = vst.msk [vmem:[%s318 + $0x139] sm:$0xff] %vm309, %v715
        %748 = vst.msk [vmem:[%s318 + $0x141] sm:$0xff] %vm309, %v716
        %749 = vst.msk [vmem:[%s318 + $0x151] sm:$0xff] %vm309, %v717
        %750 = vst.msk [vmem:[%s318 + $0x159] sm:$0xff] %vm309, %v718
        %751 = vst.msk [vmem:[%s318 + $0x169] sm:$0xff] %vm309, %v719
        %752 = vst.msk [vmem:[%s318 + $0x171] sm:$0xff] %vm309, %v720
        %v753 = vld [vmem:[#allocation2] sm:$0xff]
        %v754 = vld [vmem:[#allocation2 + $0x8] sm:$0xff]
        %v755 = vld [vmem:[#allocation2 + $0x18] sm:$0xff]
        %v756 = vld [vmem:[#allocation2 + $0x20] sm:$0xff]
        %v757 = vld [vmem:[#allocation2 + $0x30] sm:$0xff]
        %v758 = vld [vmem:[#allocation2 + $0x38] sm:$0xff]
        %v759 = vld [vmem:[#allocation2 + $0x48] sm:$0xff]
        %v760 = vld [vmem:[#allocation2 + $0x50] sm:$0xff]
        %v761 = vld [vmem:[#allocation2 + $0x60] sm:$0xff]
        %v762 = vld [vmem:[#allocation2 + $0x68] sm:$0xff]
        %v763 = vld [vmem:[#allocation2 + $0x78] sm:$0xff]
        %v764 = vld [vmem:[#allocation2 + $0x80] sm:$0xff]
        %v765 = vld [vmem:[#allocation2 + $0x90] sm:$0xff]
        %v766 = vld [vmem:[#allocation2 + $0x98] sm:$0xff]
        %v767 = vld [vmem:[#allocation2 + $0xa8] sm:$0xff]
        %v768 = vld [vmem:[#allocation2 + $0xb0] sm:$0xff]
        %v769 = vld [vmem:[#allocation2 + $0xc0] sm:$0xff]
        %v770 = vld [vmem:[#allocation2 + $0xc8] sm:$0xff]
        %v771 = vld [vmem:[#allocation2 + $0xd8] sm:$0xff]
        %v772 = vld [vmem:[#allocation2 + $0xe0] sm:$0xff]
        %v773 = vld [vmem:[#allocation2 + $0xf0] sm:$0xff]
        %v774 = vld [vmem:[#allocation2 + $0xf8] sm:$0xff]
        %v775 = vld [vmem:[#allocation2 + $0x108] sm:$0xff]
        %v776 = vld [vmem:[#allocation2 + $0x110] sm:$0xff]
        %v777 = vld [vmem:[#allocation2 + $0x120] sm:$0xff]
        %v778 = vld [vmem:[#allocation2 + $0x128] sm:$0xff]
        %v779 = vld [vmem:[#allocation2 + $0x138] sm:$0xff]
        %v780 = vld [vmem:[#allocation2 + $0x140] sm:$0xff]
        %v781 = vld [vmem:[#allocation2 + $0x150] sm:$0xff]
        %v782 = vld [vmem:[#allocation2 + $0x158] sm:$0xff]
        %v783 = vld [vmem:[#allocation2 + $0x168] sm:$0xff]
        %v784 = vld [vmem:[#allocation2 + $0x170] sm:$0xff]
        %v785 = vld [vmem:[#allocation2 + $0x1] sm:$0xff]
        %v786 = vld [vmem:[#allocation2 + $0x9] sm:$0xff]
        %v787 = vld [vmem:[#allocation2 + $0x19] sm:$0xff]
        %v788 = vld [vmem:[#allocation2 + $0x21] sm:$0xff]
        %v789 = vld [vmem:[#allocation2 + $0x31] sm:$0xff]
        %v790 = vld [vmem:[#allocation2 + $0x39] sm:$0xff]
        %v791 = vld [vmem:[#allocation2 + $0x49] sm:$0xff]
        %v792 = vld [vmem:[#allocation2 + $0x51] sm:$0xff]
        %v793 = vld [vmem:[#allocation2 + $0x61] sm:$0xff]
        %v794 = vld [vmem:[#allocation2 + $0x69] sm:$0xff]
        %v795 = vld [vmem:[#allocation2 + $0x79] sm:$0xff]
        %v796 = vld [vmem:[#allocation2 + $0x81] sm:$0xff]
        %v797 = vld [vmem:[#allocation2 + $0x91] sm:$0xff]
        %v798 = vld [vmem:[#allocation2 + $0x99] sm:$0xff]
        %v799 = vld [vmem:[#allocation2 + $0xa9] sm:$0xff]
        %v800 = vld [vmem:[#allocation2 + $0xb1] sm:$0xff]
        %v801 = vld [vmem:[#allocation2 + $0xc1] sm:$0xff]
        %v802 = vld [vmem:[#allocation2 + $0xc9] sm:$0xff]
        %v803 = vld [vmem:[#allocation2 + $0xd9] sm:$0xff]
        %v804 = vld [vmem:[#allocation2 + $0xe1] sm:$0xff]
        %v805 = vld [vmem:[#allocation2 + $0xf1] sm:$0xff]
        %v806 = vld [vmem:[#allocation2 + $0xf9] sm:$0xff]
        %v807 = vld [vmem:[#allocation2 + $0x109] sm:$0xff]
        %v808 = vld [vmem:[#allocation2 + $0x111] sm:$0xff]
        %v809 = vld [vmem:[#allocation2 + $0x121] sm:$0xff]
        %v810 = vld [vmem:[#allocation2 + $0x129] sm:$0xff]
        %v811 = vld [vmem:[#allocation2 + $0x139] sm:$0xff]
        %v812 = vld [vmem:[#allocation2 + $0x141] sm:$0xff]
        %v813 = vld [vmem:[#allocation2 + $0x151] sm:$0xff]
        %v814 = vld [vmem:[#allocation2 + $0x159] sm:$0xff]
        %v815 = vld [vmem:[#allocation2 + $0x169] sm:$0xff]
        %v816 = vld [vmem:[#allocation2 + $0x171] sm:$0xff]
        %v817 = vld [vmem:[#allocation2 + $0x2] sm:$0xff]
        %v818 = vld [vmem:[#allocation2 + $0xa] sm:$0xff]
        %v819 = vld [vmem:[#allocation2 + $0x1a] sm:$0xff]
        %v820 = vld [vmem:[#allocation2 + $0x22] sm:$0xff]
        %v821 = vld [vmem:[#allocation2 + $0x32] sm:$0xff]
        %v822 = vld [vmem:[#allocation2 + $0x3a] sm:$0xff]
        %v823 = vld [vmem:[#allocation2 + $0x4a] sm:$0xff]
        %v824 = vld [vmem:[#allocation2 + $0x52] sm:$0xff]
        %v825 = vld [vmem:[#allocation2 + $0x62] sm:$0xff]
        %v826 = vld [vmem:[#allocation2 + $0x6a] sm:$0xff]
        %v827 = vld [vmem:[#allocation2 + $0x7a] sm:$0xff]
        %v828 = vld [vmem:[#allocation2 + $0x82] sm:$0xff]
        %v829 = vld [vmem:[#allocation2 + $0x92] sm:$0xff]
        %v830 = vld [vmem:[#allocation2 + $0x9a] sm:$0xff]
        %v831 = vld [vmem:[#allocation2 + $0xaa] sm:$0xff]
        %v832 = vld [vmem:[#allocation2 + $0xb2] sm:$0xff]
        %v833 = vld [vmem:[#allocation2 + $0xc2] sm:$0xff]
        %v834 = vld [vmem:[#allocation2 + $0xca] sm:$0xff]
        %v835 = vld [vmem:[#allocation2 + $0xda] sm:$0xff]
        %v836 = vld [vmem:[#allocation2 + $0xe2] sm:$0xff]
        %v837 = vld [vmem:[#allocation2 + $0xf2] sm:$0xff]
        %v838 = vld [vmem:[#allocation2 + $0xfa] sm:$0xff]
        %v839 = vld [vmem:[#allocation2 + $0x10a] sm:$0xff]
        %v840 = vld [vmem:[#allocation2 + $0x112] sm:$0xff]
        %v841 = vld [vmem:[#allocation2 + $0x122] sm:$0xff]
        %v842 = vld [vmem:[#allocation2 + $0x12a] sm:$0xff]
        %v843 = vld [vmem:[#allocation2 + $0x13a] sm:$0xff]
        %v844 = vld [vmem:[#allocation2 + $0x142] sm:$0xff]
        %v845 = vld [vmem:[#allocation2 + $0x152] sm:$0xff]
        %v846 = vld [vmem:[#allocation2 + $0x15a] sm:$0xff]
        %v847 = vld [vmem:[#allocation2 + $0x16a] sm:$0xff]
        %v848 = vld [vmem:[#allocation2 + $0x172] sm:$0xff]
        %v849 = vld [vmem:[%s318] sm:$0xff]
        %v850 = vld [vmem:[%s318 + $0x8] sm:$0xff]
        %v851 = vld [vmem:[%s318 + $0x18] sm:$0xff]
        %v852 = vld [vmem:[%s318 + $0x20] sm:$0xff]
        %v853 = vld [vmem:[%s318 + $0x30] sm:$0xff]
        %v854 = vld [vmem:[%s318 + $0x38] sm:$0xff]
        %v855 = vld [vmem:[%s318 + $0x48] sm:$0xff]
        %v856 = vld [vmem:[%s318 + $0x50] sm:$0xff]
        %v857 = vld [vmem:[%s318 + $0x60] sm:$0xff]
        %v858 = vld [vmem:[%s318 + $0x68] sm:$0xff]
        %v859 = vld [vmem:[%s318 + $0x78] sm:$0xff]
        %v860 = vld [vmem:[%s318 + $0x80] sm:$0xff]
        %v861 = vld [vmem:[%s318 + $0x90] sm:$0xff]
        %v862 = vld [vmem:[%s318 + $0x98] sm:$0xff]
        %v863 = vld [vmem:[%s318 + $0xa8] sm:$0xff]
        %v864 = vld [vmem:[%s318 + $0xb0] sm:$0xff]
        %v865 = vld [vmem:[%s318 + $0xc0] sm:$0xff]
        %v866 = vld [vmem:[%s318 + $0xc8] sm:$0xff]
        %v867 = vld [vmem:[%s318 + $0xd8] sm:$0xff]
        %v868 = vld [vmem:[%s318 + $0xe0] sm:$0xff]
        %v869 = vld [vmem:[%s318 + $0xf0] sm:$0xff]
        %v870 = vld [vmem:[%s318 + $0xf8] sm:$0xff]
        %v871 = vld [vmem:[%s318 + $0x108] sm:$0xff]
        %v872 = vld [vmem:[%s318 + $0x110] sm:$0xff]
        %v873 = vld [vmem:[%s318 + $0x120] sm:$0xff]
        %v874 = vld [vmem:[%s318 + $0x128] sm:$0xff]
        %v875 = vld [vmem:[%s318 + $0x138] sm:$0xff]
        %v876 = vld [vmem:[%s318 + $0x140] sm:$0xff]
        %v877 = vld [vmem:[%s318 + $0x150] sm:$0xff]
        %v878 = vld [vmem:[%s318 + $0x158] sm:$0xff]
        %v879 = vld [vmem:[%s318 + $0x168] sm:$0xff]
        %v880 = vld [vmem:[%s318 + $0x170] sm:$0xff]
        %v881 = vld [vmem:[%s318 + $0x1] sm:$0xff]
        %v882 = vld [vmem:[%s318 + $0x9] sm:$0xff]
        %v883 = vld [vmem:[%s318 + $0x19] sm:$0xff]
        %v884 = vld [vmem:[%s318 + $0x21] sm:$0xff]
        %v885 = vld [vmem:[%s318 + $0x31] sm:$0xff]
        %v886 = vld [vmem:[%s318 + $0x39] sm:$0xff]
        %v887 = vld [vmem:[%s318 + $0x49] sm:$0xff]
        %v888 = vld [vmem:[%s318 + $0x51] sm:$0xff]
        %v889 = vld [vmem:[%s318 + $0x61] sm:$0xff]
        %v890 = vld [vmem:[%s318 + $0x69] sm:$0xff]
        %v891 = vld [vmem:[%s318 + $0x79] sm:$0xff]
        %v892 = vld [vmem:[%s318 + $0x81] sm:$0xff]
        %v893 = vld [vmem:[%s318 + $0x91] sm:$0xff]
        %v894 = vld [vmem:[%s318 + $0x99] sm:$0xff]
        %v895 = vld [vmem:[%s318 + $0xa9] sm:$0xff]
        %v896 = vld [vmem:[%s318 + $0xb1] sm:$0xff]
        %v897 = vld [vmem:[%s318 + $0xc1] sm:$0xff]
        %v898 = vld [vmem:[%s318 + $0xc9] sm:$0xff]
        %v899 = vld [vmem:[%s318 + $0xd9] sm:$0xff]
        %v900 = vld [vmem:[%s318 + $0xe1] sm:$0xff]
        %v901 = vld [vmem:[%s318 + $0xf1] sm:$0xff]
        %v902 = vld [vmem:[%s318 + $0xf9] sm:$0xff]
        %v903 = vld [vmem:[%s318 + $0x109] sm:$0xff]
        %v904 = vld [vmem:[%s318 + $0x111] sm:$0xff]
        %v905 = vld [vmem:[%s318 + $0x121] sm:$0xff]
        %v906 = vld [vmem:[%s318 + $0x129] sm:$0xff]
        %v907 = vld [vmem:[%s318 + $0x139] sm:$0xff]
        %v908 = vld [vmem:[%s318 + $0x141] sm:$0xff]
        %v909 = vld [vmem:[%s318 + $0x151] sm:$0xff]
        %v910 = vld [vmem:[%s318 + $0x159] sm:$0xff]
        %v911 = vld [vmem:[%s318 + $0x169] sm:$0xff]
        %v912 = vld [vmem:[%s318 + $0x171] sm:$0xff]
        %v913 = vld [vmem:[%s318 + $0x2] sm:$0xff]
        %v914 = vld [vmem:[%s318 + $0xa] sm:$0xff]
        %v915 = vld [vmem:[%s318 + $0x1a] sm:$0xff]
        %v916 = vld [vmem:[%s318 + $0x22] sm:$0xff]
        %v917 = vld [vmem:[%s318 + $0x32] sm:$0xff]
        %v918 = vld [vmem:[%s318 + $0x3a] sm:$0xff]
        %v919 = vld [vmem:[%s318 + $0x4a] sm:$0xff]
        %v920 = vld [vmem:[%s318 + $0x52] sm:$0xff]
        %v921 = vld [vmem:[%s318 + $0x62] sm:$0xff]
        %v922 = vld [vmem:[%s318 + $0x6a] sm:$0xff]
        %v923 = vld [vmem:[%s318 + $0x7a] sm:$0xff]
        %v924 = vld [vmem:[%s318 + $0x82] sm:$0xff]
        %v925 = vld [vmem:[%s318 + $0x92] sm:$0xff]
        %v926 = vld [vmem:[%s318 + $0x9a] sm:$0xff]
        %v927 = vld [vmem:[%s318 + $0xaa] sm:$0xff]
        %v928 = vld [vmem:[%s318 + $0xb2] sm:$0xff]
        %v929 = vld [vmem:[%s318 + $0xc2] sm:$0xff]
        %v930 = vld [vmem:[%s318 + $0xca] sm:$0xff]
        %v931 = vld [vmem:[%s318 + $0xda] sm:$0xff]
        %v932 = vld [vmem:[%s318 + $0xe2] sm:$0xff]
        %v933 = vld [vmem:[%s318 + $0xf2] sm:$0xff]
        %v934 = vld [vmem:[%s318 + $0xfa] sm:$0xff]
        %v935 = vld [vmem:[%s318 + $0x10a] sm:$0xff]
        %v936 = vld [vmem:[%s318 + $0x112] sm:$0xff]
        %v937 = vld [vmem:[%s318 + $0x122] sm:$0xff]
        %v938 = vld [vmem:[%s318 + $0x12a] sm:$0xff]
        %v939 = vld [vmem:[%s318 + $0x13a] sm:$0xff]
        %v940 = vld [vmem:[%s318 + $0x142] sm:$0xff]
        %v941 = vld [vmem:[%s318 + $0x152] sm:$0xff]
        %v942 = vld [vmem:[%s318 + $0x15a] sm:$0xff]
        %v943 = vld [vmem:[%s318 + $0x16a] sm:$0xff]
        %v944 = vld [vmem:[%s318 + $0x172] sm:$0xff]
        %s945 = scalar_lea.vmem [#allocation2], 48
        %v946 = vld [vmem:[%s945] sm:$0xff]
        %v947 = vld [vmem:[%s945 + $0x8] sm:$0xff]
        %v948 = vld [vmem:[%s945 + $0x18] sm:$0xff]
        %v949 = vld [vmem:[%s945 + $0x20] sm:$0xff]
        %v950 = vld [vmem:[%s945 + $0x30] sm:$0xff]
        %v951 = vld [vmem:[%s945 + $0x38] sm:$0xff]
        %v952 = vld [vmem:[%s945 + $0x48] sm:$0xff]
        %v953 = vld [vmem:[%s945 + $0x50] sm:$0xff]
        %v954 = vld [vmem:[%s945 + $0x60] sm:$0xff]
        %v955 = vld [vmem:[%s945 + $0x68] sm:$0xff]
        %v956 = vld [vmem:[%s945 + $0x78] sm:$0xff]
        %v957 = vld [vmem:[%s945 + $0x80] sm:$0xff]
        %v958 = vld [vmem:[%s945 + $0x90] sm:$0xff]
        %v959 = vld [vmem:[%s945 + $0x98] sm:$0xff]
        %v960 = vld [vmem:[%s945 + $0xa8] sm:$0xff]
        %v961 = vld [vmem:[%s945 + $0xb0] sm:$0xff]
        %v962 = vld [vmem:[%s945 + $0xc0] sm:$0xff]
        %v963 = vld [vmem:[%s945 + $0xc8] sm:$0xff]
        %v964 = vld [vmem:[%s945 + $0xd8] sm:$0xff]
        %v965 = vld [vmem:[%s945 + $0xe0] sm:$0xff]
        %v966 = vld [vmem:[%s945 + $0xf0] sm:$0xff]
        %v967 = vld [vmem:[%s945 + $0xf8] sm:$0xff]
        %v968 = vld [vmem:[%s945 + $0x108] sm:$0xff]
        %v969 = vld [vmem:[%s945 + $0x110] sm:$0xff]
        %v970 = vld [vmem:[%s945 + $0x120] sm:$0xff]
        %v971 = vld [vmem:[%s945 + $0x128] sm:$0xff]
        %v972 = vld [vmem:[%s945 + $0x138] sm:$0xff]
        %v973 = vld [vmem:[%s945 + $0x140] sm:$0xff]
        %v974 = vld [vmem:[%s945 + $0x150] sm:$0xff]
        %v975 = vld [vmem:[%s945 + $0x158] sm:$0xff]
        %v976 = vld [vmem:[%s945 + $0x168] sm:$0xff]
        %v977 = vld [vmem:[%s945 + $0x170] sm:$0xff]
        %v978 = vld [vmem:[%s945 + $0x1] sm:$0xff]
        %v979 = vld [vmem:[%s945 + $0x9] sm:$0xff]
        %v980 = vld [vmem:[%s945 + $0x19] sm:$0xff]
        %v981 = vld [vmem:[%s945 + $0x21] sm:$0xff]
        %v982 = vld [vmem:[%s945 + $0x31] sm:$0xff]
        %v983 = vld [vmem:[%s945 + $0x39] sm:$0xff]
        %v984 = vld [vmem:[%s945 + $0x49] sm:$0xff]
        %v985 = vld [vmem:[%s945 + $0x51] sm:$0xff]
        %v986 = vld [vmem:[%s945 + $0x61] sm:$0xff]
        %v987 = vld [vmem:[%s945 + $0x69] sm:$0xff]
        %v988 = vld [vmem:[%s945 + $0x79] sm:$0xff]
        %v989 = vld [vmem:[%s945 + $0x81] sm:$0xff]
        %v990 = vld [vmem:[%s945 + $0x91] sm:$0xff]
        %v991 = vld [vmem:[%s945 + $0x99] sm:$0xff]
        %v992 = vld [vmem:[%s945 + $0xa9] sm:$0xff]
        %v993 = vld [vmem:[%s945 + $0xb1] sm:$0xff]
        %v994 = vld [vmem:[%s945 + $0xc1] sm:$0xff]
        %v995 = vld [vmem:[%s945 + $0xc9] sm:$0xff]
        %v996 = vld [vmem:[%s945 + $0xd9] sm:$0xff]
        %v997 = vld [vmem:[%s945 + $0xe1] sm:$0xff]
        %v998 = vld [vmem:[%s945 + $0xf1] sm:$0xff]
        %v999 = vld [vmem:[%s945 + $0xf9] sm:$0xff]
        %v1000 = vld [vmem:[%s945 + $0x109] sm:$0xff]
        %v1001 = vld [vmem:[%s945 + $0x111] sm:$0xff]
        %v1002 = vld [vmem:[%s945 + $0x121] sm:$0xff]
        %v1003 = vld [vmem:[%s945 + $0x129] sm:$0xff]
        %v1004 = vld [vmem:[%s945 + $0x139] sm:$0xff]
        %v1005 = vld [vmem:[%s945 + $0x141] sm:$0xff]
        %v1006 = vld [vmem:[%s945 + $0x151] sm:$0xff]
        %v1007 = vld [vmem:[%s945 + $0x159] sm:$0xff]
        %v1008 = vld [vmem:[%s945 + $0x169] sm:$0xff]
        %v1009 = vld [vmem:[%s945 + $0x171] sm:$0xff]
        %v1010 = vld [vmem:[%s945 + $0x2] sm:$0xff]
        %v1011 = vld [vmem:[%s945 + $0xa] sm:$0xff]
        %v1012 = vld [vmem:[%s945 + $0x1a] sm:$0xff]
        %v1013 = vld [vmem:[%s945 + $0x22] sm:$0xff]
        %v1014 = vld [vmem:[%s945 + $0x32] sm:$0xff]
        %v1015 = vld [vmem:[%s945 + $0x3a] sm:$0xff]
        %v1016 = vld [vmem:[%s945 + $0x4a] sm:$0xff]
        %v1017 = vld [vmem:[%s945 + $0x52] sm:$0xff]
        %v1018 = vld [vmem:[%s945 + $0x62] sm:$0xff]
        %v1019 = vld [vmem:[%s945 + $0x6a] sm:$0xff]
        %v1020 = vld [vmem:[%s945 + $0x7a] sm:$0xff]
        %v1021 = vld [vmem:[%s945 + $0x82] sm:$0xff]
        %v1022 = vld [vmem:[%s945 + $0x92] sm:$0xff]
        %v1023 = vld [vmem:[%s945 + $0x9a] sm:$0xff]
        %v1024 = vld [vmem:[%s945 + $0xaa] sm:$0xff]
        %v1025 = vld [vmem:[%s945 + $0xb2] sm:$0xff]
        %v1026 = vld [vmem:[%s945 + $0xc2] sm:$0xff]
        %v1027 = vld [vmem:[%s945 + $0xca] sm:$0xff]
        %v1028 = vld [vmem:[%s945 + $0xda] sm:$0xff]
        %v1029 = vld [vmem:[%s945 + $0xe2] sm:$0xff]
        %v1030 = vld [vmem:[%s945 + $0xf2] sm:$0xff]
        %v1031 = vld [vmem:[%s945 + $0xfa] sm:$0xff]
        %v1032 = vld [vmem:[%s945 + $0x10a] sm:$0xff]
        %v1033 = vld [vmem:[%s945 + $0x112] sm:$0xff]
        %v1034 = vld [vmem:[%s945 + $0x122] sm:$0xff]
        %v1035 = vld [vmem:[%s945 + $0x12a] sm:$0xff]
        %v1036 = vld [vmem:[%s945 + $0x13a] sm:$0xff]
        %v1037 = vld [vmem:[%s945 + $0x142] sm:$0xff]
        %v1038 = vld [vmem:[%s945 + $0x152] sm:$0xff]
        %v1039 = vld [vmem:[%s945 + $0x15a] sm:$0xff]
        %v1040 = vld [vmem:[%s945 + $0x16a] sm:$0xff]
        %v1041 = vld [vmem:[%s945 + $0x172] sm:$0xff]
        %1074 = vrot.lane.b32.xlu0 %v785, 16
        %v1075 = vpop.permute.xlu0 %1074
        %1076 = vrot.lane.b32.xlu0 %v786, 16
        %v1077 = vpop.permute.xlu0 %1076
        %1078 = vrot.lane.b32.xlu0 %v787, 16
        %v1079 = vpop.permute.xlu0 %1078
        %1080 = vrot.lane.b32.xlu0 %v788, 16
        %v1081 = vpop.permute.xlu0 %1080
        %1082 = vrot.lane.b32.xlu0 %v789, 16
        %v1083 = vpop.permute.xlu0 %1082
        %1084 = vrot.lane.b32.xlu0 %v790, 16
        %v1085 = vpop.permute.xlu0 %1084
        %1086 = vrot.lane.b32.xlu0 %v791, 16
        %v1087 = vpop.permute.xlu0 %1086
        %1088 = vrot.lane.b32.xlu0 %v792, 16
        %v1089 = vpop.permute.xlu0 %1088
        %1090 = vrot.lane.b32.xlu0 %v793, 16
        %v1091 = vpop.permute.xlu0 %1090
        %1092 = vrot.lane.b32.xlu0 %v794, 16
        %v1093 = vpop.permute.xlu0 %1092
        %1094 = vrot.lane.b32.xlu0 %v795, 16
        %v1095 = vpop.permute.xlu0 %1094
        %1096 = vrot.lane.b32.xlu0 %v796, 16
        %v1097 = vpop.permute.xlu0 %1096
        %1098 = vrot.lane.b32.xlu0 %v797, 16
        %v1099 = vpop.permute.xlu0 %1098
        %1100 = vrot.lane.b32.xlu0 %v798, 16
        %v1101 = vpop.permute.xlu0 %1100
        %1102 = vrot.lane.b32.xlu0 %v799, 16
        %v1103 = vpop.permute.xlu0 %1102
        %1104 = vrot.lane.b32.xlu0 %v800, 16
        %v1105 = vpop.permute.xlu0 %1104
        %1106 = vrot.lane.b32.xlu0 %v801, 16
        %v1107 = vpop.permute.xlu0 %1106
        %1108 = vrot.lane.b32.xlu0 %v802, 16
        %v1109 = vpop.permute.xlu0 %1108
        %1110 = vrot.lane.b32.xlu0 %v803, 16
        %v1111 = vpop.permute.xlu0 %1110
        %1112 = vrot.lane.b32.xlu0 %v804, 16
        %v1113 = vpop.permute.xlu0 %1112
        %1114 = vrot.lane.b32.xlu0 %v805, 16
        %v1115 = vpop.permute.xlu0 %1114
        %1116 = vrot.lane.b32.xlu0 %v806, 16
        %v1117 = vpop.permute.xlu0 %1116
        %1118 = vrot.lane.b32.xlu0 %v807, 16
        %v1119 = vpop.permute.xlu0 %1118
        %1120 = vrot.lane.b32.xlu0 %v808, 16
        %v1121 = vpop.permute.xlu0 %1120
        %1122 = vrot.lane.b32.xlu0 %v809, 16
        %v1123 = vpop.permute.xlu0 %1122
        %1124 = vrot.lane.b32.xlu0 %v810, 16
        %v1125 = vpop.permute.xlu0 %1124
        %1126 = vrot.lane.b32.xlu0 %v811, 16
        %v1127 = vpop.permute.xlu0 %1126
        %1128 = vrot.lane.b32.xlu0 %v812, 16
        %v1129 = vpop.permute.xlu0 %1128
        %1130 = vrot.lane.b32.xlu0 %v813, 16
        %v1131 = vpop.permute.xlu0 %1130
        %1132 = vrot.lane.b32.xlu0 %v814, 16
        %v1133 = vpop.permute.xlu0 %1132
        %1134 = vrot.lane.b32.xlu0 %v815, 16
        %v1135 = vpop.permute.xlu0 %1134
        %1136 = vrot.lane.b32.xlu0 %v816, 16
        %v1137 = vpop.permute.xlu0 %1136
        %1202 = vrot.lane.b32.xlu0 %v817, 32
        %v1203 = vpop.permute.xlu0 %1202
        %1204 = vrot.lane.b32.xlu0 %v818, 32
        %v1205 = vpop.permute.xlu0 %1204
        %1206 = vrot.lane.b32.xlu0 %v819, 32
        %v1207 = vpop.permute.xlu0 %1206
        %1208 = vrot.lane.b32.xlu0 %v820, 32
        %v1209 = vpop.permute.xlu0 %1208
        %1210 = vrot.lane.b32.xlu0 %v821, 32
        %v1211 = vpop.permute.xlu0 %1210
        %1212 = vrot.lane.b32.xlu0 %v822, 32
        %v1213 = vpop.permute.xlu0 %1212
        %1214 = vrot.lane.b32.xlu0 %v823, 32
        %v1215 = vpop.permute.xlu0 %1214
        %1216 = vrot.lane.b32.xlu0 %v824, 32
        %v1217 = vpop.permute.xlu0 %1216
        %1218 = vrot.lane.b32.xlu0 %v825, 32
        %v1219 = vpop.permute.xlu0 %1218
        %1220 = vrot.lane.b32.xlu0 %v826, 32
        %v1221 = vpop.permute.xlu0 %1220
        %1222 = vrot.lane.b32.xlu0 %v827, 32
        %v1223 = vpop.permute.xlu0 %1222
        %1224 = vrot.lane.b32.xlu0 %v828, 32
        %v1225 = vpop.permute.xlu0 %1224
        %1226 = vrot.lane.b32.xlu0 %v829, 32
        %v1227 = vpop.permute.xlu0 %1226
        %1228 = vrot.lane.b32.xlu0 %v830, 32
        %v1229 = vpop.permute.xlu0 %1228
        %1230 = vrot.lane.b32.xlu0 %v831, 32
        %v1231 = vpop.permute.xlu0 %1230
        %1232 = vrot.lane.b32.xlu0 %v832, 32
        %v1233 = vpop.permute.xlu0 %1232
        %1234 = vrot.lane.b32.xlu0 %v833, 32
        %v1235 = vpop.permute.xlu0 %1234
        %1236 = vrot.lane.b32.xlu0 %v834, 32
        %v1237 = vpop.permute.xlu0 %1236
        %1238 = vrot.lane.b32.xlu0 %v835, 32
        %v1239 = vpop.permute.xlu0 %1238
        %1240 = vrot.lane.b32.xlu0 %v836, 32
        %v1241 = vpop.permute.xlu0 %1240
        %1242 = vrot.lane.b32.xlu0 %v837, 32
        %v1243 = vpop.permute.xlu0 %1242
        %1244 = vrot.lane.b32.xlu0 %v838, 32
        %v1245 = vpop.permute.xlu0 %1244
        %1246 = vrot.lane.b32.xlu0 %v839, 32
        %v1247 = vpop.permute.xlu0 %1246
        %1248 = vrot.lane.b32.xlu0 %v840, 32
        %v1249 = vpop.permute.xlu0 %1248
        %1250 = vrot.lane.b32.xlu0 %v841, 32
        %v1251 = vpop.permute.xlu0 %1250
        %1252 = vrot.lane.b32.xlu0 %v842, 32
        %v1253 = vpop.permute.xlu0 %1252
        %1254 = vrot.lane.b32.xlu0 %v843, 32
        %v1255 = vpop.permute.xlu0 %1254
        %1256 = vrot.lane.b32.xlu0 %v844, 32
        %v1257 = vpop.permute.xlu0 %1256
        %1258 = vrot.lane.b32.xlu0 %v845, 32
        %v1259 = vpop.permute.xlu0 %1258
        %1260 = vrot.lane.b32.xlu0 %v846, 32
        %v1261 = vpop.permute.xlu0 %1260
        %1262 = vrot.lane.b32.xlu0 %v847, 32
        %v1263 = vpop.permute.xlu0 %1262
        %1264 = vrot.lane.b32.xlu0 %v848, 32
        %v1265 = vpop.permute.xlu0 %1264
        %1330 = vrot.lane.b32.xlu0 %v849, 48
        %v1331 = vpop.permute.xlu0 %1330
        %1332 = vrot.lane.b32.xlu0 %v850, 48
        %v1333 = vpop.permute.xlu0 %1332
        %1334 = vrot.lane.b32.xlu0 %v851, 48
        %v1335 = vpop.permute.xlu0 %1334
        %1336 = vrot.lane.b32.xlu0 %v852, 48
        %v1337 = vpop.permute.xlu0 %1336
        %1338 = vrot.lane.b32.xlu0 %v853, 48
        %v1339 = vpop.permute.xlu0 %1338
        %1340 = vrot.lane.b32.xlu0 %v854, 48
        %v1341 = vpop.permute.xlu0 %1340
        %1342 = vrot.lane.b32.xlu0 %v855, 48
        %v1343 = vpop.permute.xlu0 %1342
        %1344 = vrot.lane.b32.xlu0 %v856, 48
        %v1345 = vpop.permute.xlu0 %1344
        %1346 = vrot.lane.b32.xlu0 %v857, 48
        %v1347 = vpop.permute.xlu0 %1346
        %1348 = vrot.lane.b32.xlu0 %v858, 48
        %v1349 = vpop.permute.xlu0 %1348
        %1350 = vrot.lane.b32.xlu0 %v859, 48
        %v1351 = vpop.permute.xlu0 %1350
        %1352 = vrot.lane.b32.xlu0 %v860, 48
        %v1353 = vpop.permute.xlu0 %1352
        %1354 = vrot.lane.b32.xlu0 %v861, 48
        %v1355 = vpop.permute.xlu0 %1354
        %1356 = vrot.lane.b32.xlu0 %v862, 48
        %v1357 = vpop.permute.xlu0 %1356
        %1358 = vrot.lane.b32.xlu0 %v863, 48
        %v1359 = vpop.permute.xlu0 %1358
        %1360 = vrot.lane.b32.xlu0 %v864, 48
        %v1361 = vpop.permute.xlu0 %1360
        %1362 = vrot.lane.b32.xlu0 %v865, 48
        %v1363 = vpop.permute.xlu0 %1362
        %1364 = vrot.lane.b32.xlu0 %v866, 48
        %v1365 = vpop.permute.xlu0 %1364
        %1366 = vrot.lane.b32.xlu0 %v867, 48
        %v1367 = vpop.permute.xlu0 %1366
        %1368 = vrot.lane.b32.xlu0 %v868, 48
        %v1369 = vpop.permute.xlu0 %1368
        %1370 = vrot.lane.b32.xlu0 %v869, 48
        %v1371 = vpop.permute.xlu0 %1370
        %1372 = vrot.lane.b32.xlu0 %v870, 48
        %v1373 = vpop.permute.xlu0 %1372
        %1374 = vrot.lane.b32.xlu0 %v871, 48
        %v1375 = vpop.permute.xlu0 %1374
        %1376 = vrot.lane.b32.xlu0 %v872, 48
        %v1377 = vpop.permute.xlu0 %1376
        %1378 = vrot.lane.b32.xlu0 %v873, 48
        %v1379 = vpop.permute.xlu0 %1378
        %1380 = vrot.lane.b32.xlu0 %v874, 48
        %v1381 = vpop.permute.xlu0 %1380
        %1382 = vrot.lane.b32.xlu0 %v875, 48
        %v1383 = vpop.permute.xlu0 %1382
        %1384 = vrot.lane.b32.xlu0 %v876, 48
        %v1385 = vpop.permute.xlu0 %1384
        %1386 = vrot.lane.b32.xlu0 %v877, 48
        %v1387 = vpop.permute.xlu0 %1386
        %1388 = vrot.lane.b32.xlu0 %v878, 48
        %v1389 = vpop.permute.xlu0 %1388
        %1390 = vrot.lane.b32.xlu0 %v879, 48
        %v1391 = vpop.permute.xlu0 %1390
        %1392 = vrot.lane.b32.xlu0 %v880, 48
        %v1393 = vpop.permute.xlu0 %1392
        %1458 = vrot.lane.b32.xlu0 %v881, 64
        %v1459 = vpop.permute.xlu0 %1458
        %1460 = vrot.lane.b32.xlu0 %v882, 64
        %v1461 = vpop.permute.xlu0 %1460
        %1462 = vrot.lane.b32.xlu0 %v883, 64
        %v1463 = vpop.permute.xlu0 %1462
        %1464 = vrot.lane.b32.xlu0 %v884, 64
        %v1465 = vpop.permute.xlu0 %1464
        %1466 = vrot.lane.b32.xlu0 %v885, 64
        %v1467 = vpop.permute.xlu0 %1466
        %1468 = vrot.lane.b32.xlu0 %v886, 64
        %v1469 = vpop.permute.xlu0 %1468
        %1470 = vrot.lane.b32.xlu0 %v887, 64
        %v1471 = vpop.permute.xlu0 %1470
        %1472 = vrot.lane.b32.xlu0 %v888, 64
        %v1473 = vpop.permute.xlu0 %1472
        %1474 = vrot.lane.b32.xlu0 %v889, 64
        %v1475 = vpop.permute.xlu0 %1474
        %1476 = vrot.lane.b32.xlu0 %v890, 64
        %v1477 = vpop.permute.xlu0 %1476
        %1478 = vrot.lane.b32.xlu0 %v891, 64
        %v1479 = vpop.permute.xlu0 %1478
        %1480 = vrot.lane.b32.xlu0 %v892, 64
        %v1481 = vpop.permute.xlu0 %1480
        %1482 = vrot.lane.b32.xlu0 %v893, 64
        %v1483 = vpop.permute.xlu0 %1482
        %1484 = vrot.lane.b32.xlu0 %v894, 64
        %v1485 = vpop.permute.xlu0 %1484
        %1486 = vrot.lane.b32.xlu0 %v895, 64
        %v1487 = vpop.permute.xlu0 %1486
        %1488 = vrot.lane.b32.xlu0 %v896, 64
        %v1489 = vpop.permute.xlu0 %1488
        %1490 = vrot.lane.b32.xlu0 %v897, 64
        %v1491 = vpop.permute.xlu0 %1490
        %1492 = vrot.lane.b32.xlu0 %v898, 64
        %v1493 = vpop.permute.xlu0 %1492
        %1494 = vrot.lane.b32.xlu0 %v899, 64
        %v1495 = vpop.permute.xlu0 %1494
        %1496 = vrot.lane.b32.xlu0 %v900, 64
        %v1497 = vpop.permute.xlu0 %1496
        %1498 = vrot.lane.b32.xlu0 %v901, 64
        %v1499 = vpop.permute.xlu0 %1498
        %1500 = vrot.lane.b32.xlu0 %v902, 64
        %v1501 = vpop.permute.xlu0 %1500
        %1502 = vrot.lane.b32.xlu0 %v903, 64
        %v1503 = vpop.permute.xlu0 %1502
        %1504 = vrot.lane.b32.xlu0 %v904, 64
        %v1505 = vpop.permute.xlu0 %1504
        %1506 = vrot.lane.b32.xlu0 %v905, 64
        %v1507 = vpop.permute.xlu0 %1506
        %1508 = vrot.lane.b32.xlu0 %v906, 64
        %v1509 = vpop.permute.xlu0 %1508
        %1510 = vrot.lane.b32.xlu0 %v907, 64
        %v1511 = vpop.permute.xlu0 %1510
        %1512 = vrot.lane.b32.xlu0 %v908, 64
        %v1513 = vpop.permute.xlu0 %1512
        %1514 = vrot.lane.b32.xlu0 %v909, 64
        %v1515 = vpop.permute.xlu0 %1514
        %1516 = vrot.lane.b32.xlu0 %v910, 64
        %v1517 = vpop.permute.xlu0 %1516
        %1518 = vrot.lane.b32.xlu0 %v911, 64
        %v1519 = vpop.permute.xlu0 %1518
        %1520 = vrot.lane.b32.xlu0 %v912, 64
        %v1521 = vpop.permute.xlu0 %1520
        %1586 = vrot.lane.b32.xlu0 %v913, 80
        %v1587 = vpop.permute.xlu0 %1586
        %1588 = vrot.lane.b32.xlu0 %v914, 80
        %v1589 = vpop.permute.xlu0 %1588
        %1590 = vrot.lane.b32.xlu0 %v915, 80
        %v1591 = vpop.permute.xlu0 %1590
        %1592 = vrot.lane.b32.xlu0 %v916, 80
        %v1593 = vpop.permute.xlu0 %1592
        %1594 = vrot.lane.b32.xlu0 %v917, 80
        %v1595 = vpop.permute.xlu0 %1594
        %1596 = vrot.lane.b32.xlu0 %v918, 80
        %v1597 = vpop.permute.xlu0 %1596
        %1598 = vrot.lane.b32.xlu0 %v919, 80
        %v1599 = vpop.permute.xlu0 %1598
        %1600 = vrot.lane.b32.xlu0 %v920, 80
        %v1601 = vpop.permute.xlu0 %1600
        %1602 = vrot.lane.b32.xlu0 %v921, 80
        %v1603 = vpop.permute.xlu0 %1602
        %1604 = vrot.lane.b32.xlu0 %v922, 80
        %v1605 = vpop.permute.xlu0 %1604
        %1606 = vrot.lane.b32.xlu0 %v923, 80
        %v1607 = vpop.permute.xlu0 %1606
        %1608 = vrot.lane.b32.xlu0 %v924, 80
        %v1609 = vpop.permute.xlu0 %1608
        %1610 = vrot.lane.b32.xlu0 %v925, 80
        %v1611 = vpop.permute.xlu0 %1610
        %1612 = vrot.lane.b32.xlu0 %v926, 80
        %v1613 = vpop.permute.xlu0 %1612
        %1614 = vrot.lane.b32.xlu0 %v927, 80
        %v1615 = vpop.permute.xlu0 %1614
        %1616 = vrot.lane.b32.xlu0 %v928, 80
        %v1617 = vpop.permute.xlu0 %1616
        %1618 = vrot.lane.b32.xlu0 %v929, 80
        %v1619 = vpop.permute.xlu0 %1618
        %1620 = vrot.lane.b32.xlu0 %v930, 80
        %v1621 = vpop.permute.xlu0 %1620
        %1622 = vrot.lane.b32.xlu0 %v931, 80
        %v1623 = vpop.permute.xlu0 %1622
        %1624 = vrot.lane.b32.xlu0 %v932, 80
        %v1625 = vpop.permute.xlu0 %1624
        %1626 = vrot.lane.b32.xlu0 %v933, 80
        %v1627 = vpop.permute.xlu0 %1626
        %1628 = vrot.lane.b32.xlu0 %v934, 80
        %v1629 = vpop.permute.xlu0 %1628
        %1630 = vrot.lane.b32.xlu0 %v935, 80
        %v1631 = vpop.permute.xlu0 %1630
        %1632 = vrot.lane.b32.xlu0 %v936, 80
        %v1633 = vpop.permute.xlu0 %1632
        %1634 = vrot.lane.b32.xlu0 %v937, 80
        %v1635 = vpop.permute.xlu0 %1634
        %1636 = vrot.lane.b32.xlu0 %v938, 80
        %v1637 = vpop.permute.xlu0 %1636
        %1638 = vrot.lane.b32.xlu0 %v939, 80
        %v1639 = vpop.permute.xlu0 %1638
        %1640 = vrot.lane.b32.xlu0 %v940, 80
        %v1641 = vpop.permute.xlu0 %1640
        %1642 = vrot.lane.b32.xlu0 %v941, 80
        %v1643 = vpop.permute.xlu0 %1642
        %1644 = vrot.lane.b32.xlu0 %v942, 80
        %v1645 = vpop.permute.xlu0 %1644
        %1646 = vrot.lane.b32.xlu0 %v943, 80
        %v1647 = vpop.permute.xlu0 %1646
        %1648 = vrot.lane.b32.xlu0 %v944, 80
        %v1649 = vpop.permute.xlu0 %1648
        %1714 = vrot.lane.b32.xlu0 %v946, 96
        %v1715 = vpop.permute.xlu0 %1714
        %1716 = vrot.lane.b32.xlu0 %v947, 96
        %v1717 = vpop.permute.xlu0 %1716
        %1718 = vrot.lane.b32.xlu0 %v948, 96
        %v1719 = vpop.permute.xlu0 %1718
        %1720 = vrot.lane.b32.xlu0 %v949, 96
        %v1721 = vpop.permute.xlu0 %1720
        %1722 = vrot.lane.b32.xlu0 %v950, 96
        %v1723 = vpop.permute.xlu0 %1722
        %1724 = vrot.lane.b32.xlu0 %v951, 96
        %v1725 = vpop.permute.xlu0 %1724
        %1726 = vrot.lane.b32.xlu0 %v952, 96
        %v1727 = vpop.permute.xlu0 %1726
        %1728 = vrot.lane.b32.xlu0 %v953, 96
        %v1729 = vpop.permute.xlu0 %1728
        %1730 = vrot.lane.b32.xlu0 %v954, 96
        %v1731 = vpop.permute.xlu0 %1730
        %1732 = vrot.lane.b32.xlu0 %v955, 96
        %v1733 = vpop.permute.xlu0 %1732
        %1734 = vrot.lane.b32.xlu0 %v956, 96
        %v1735 = vpop.permute.xlu0 %1734
        %1736 = vrot.lane.b32.xlu0 %v957, 96
        %v1737 = vpop.permute.xlu0 %1736
        %1738 = vrot.lane.b32.xlu0 %v958, 96
        %v1739 = vpop.permute.xlu0 %1738
        %1740 = vrot.lane.b32.xlu0 %v959, 96
        %v1741 = vpop.permute.xlu0 %1740
        %1742 = vrot.lane.b32.xlu0 %v960, 96
        %v1743 = vpop.permute.xlu0 %1742
        %1744 = vrot.lane.b32.xlu0 %v961, 96
        %v1745 = vpop.permute.xlu0 %1744
        %1746 = vrot.lane.b32.xlu0 %v962, 96
        %v1747 = vpop.permute.xlu0 %1746
        %1748 = vrot.lane.b32.xlu0 %v963, 96
        %v1749 = vpop.permute.xlu0 %1748
        %1750 = vrot.lane.b32.xlu0 %v964, 96
        %v1751 = vpop.permute.xlu0 %1750
        %1752 = vrot.lane.b32.xlu0 %v965, 96
        %v1753 = vpop.permute.xlu0 %1752
        %1754 = vrot.lane.b32.xlu0 %v966, 96
        %v1755 = vpop.permute.xlu0 %1754
        %1756 = vrot.lane.b32.xlu0 %v967, 96
        %v1757 = vpop.permute.xlu0 %1756
        %1758 = vrot.lane.b32.xlu0 %v968, 96
        %v1759 = vpop.permute.xlu0 %1758
        %1760 = vrot.lane.b32.xlu0 %v969, 96
        %v1761 = vpop.permute.xlu0 %1760
        %1762 = vrot.lane.b32.xlu0 %v970, 96
        %v1763 = vpop.permute.xlu0 %1762
        %1764 = vrot.lane.b32.xlu0 %v971, 96
        %v1765 = vpop.permute.xlu0 %1764
        %1766 = vrot.lane.b32.xlu0 %v972, 96
        %v1767 = vpop.permute.xlu0 %1766
        %1768 = vrot.lane.b32.xlu0 %v973, 96
        %v1769 = vpop.permute.xlu0 %1768
        %1770 = vrot.lane.b32.xlu0 %v974, 96
        %v1771 = vpop.permute.xlu0 %1770
        %1772 = vrot.lane.b32.xlu0 %v975, 96
        %v1773 = vpop.permute.xlu0 %1772
        %1774 = vrot.lane.b32.xlu0 %v976, 96
        %v1775 = vpop.permute.xlu0 %1774
        %1776 = vrot.lane.b32.xlu0 %v977, 96
        %v1777 = vpop.permute.xlu0 %1776
        %1842 = vrot.lane.b32.xlu0 %v978, 112
        %v1843 = vpop.permute.xlu0 %1842
        %1844 = vrot.lane.b32.xlu0 %v979, 112
        %v1845 = vpop.permute.xlu0 %1844
        %1846 = vrot.lane.b32.xlu0 %v980, 112
        %v1847 = vpop.permute.xlu0 %1846
        %1848 = vrot.lane.b32.xlu0 %v981, 112
        %v1849 = vpop.permute.xlu0 %1848
        %1850 = vrot.lane.b32.xlu0 %v982, 112
        %v1851 = vpop.permute.xlu0 %1850
        %1852 = vrot.lane.b32.xlu0 %v983, 112
        %v1853 = vpop.permute.xlu0 %1852
        %1854 = vrot.lane.b32.xlu0 %v984, 112
        %v1855 = vpop.permute.xlu0 %1854
        %1856 = vrot.lane.b32.xlu0 %v985, 112
        %v1857 = vpop.permute.xlu0 %1856
        %1858 = vrot.lane.b32.xlu0 %v986, 112
        %v1859 = vpop.permute.xlu0 %1858
        %1860 = vrot.lane.b32.xlu0 %v987, 112
        %v1861 = vpop.permute.xlu0 %1860
        %1862 = vrot.lane.b32.xlu0 %v988, 112
        %v1863 = vpop.permute.xlu0 %1862
        %1864 = vrot.lane.b32.xlu0 %v989, 112
        %v1865 = vpop.permute.xlu0 %1864
        %1866 = vrot.lane.b32.xlu0 %v990, 112
        %v1867 = vpop.permute.xlu0 %1866
        %1868 = vrot.lane.b32.xlu0 %v991, 112
        %v1869 = vpop.permute.xlu0 %1868
        %1870 = vrot.lane.b32.xlu0 %v992, 112
        %v1871 = vpop.permute.xlu0 %1870
        %1872 = vrot.lane.b32.xlu0 %v993, 112
        %v1873 = vpop.permute.xlu0 %1872
        %1874 = vrot.lane.b32.xlu0 %v994, 112
        %v1875 = vpop.permute.xlu0 %1874
        %1876 = vrot.lane.b32.xlu0 %v995, 112
        %v1877 = vpop.permute.xlu0 %1876
        %1878 = vrot.lane.b32.xlu0 %v996, 112
        %v1879 = vpop.permute.xlu0 %1878
        %1880 = vrot.lane.b32.xlu0 %v997, 112
        %v1881 = vpop.permute.xlu0 %1880
        %1882 = vrot.lane.b32.xlu0 %v998, 112
        %v1883 = vpop.permute.xlu0 %1882
        %1884 = vrot.lane.b32.xlu0 %v999, 112
        %v1885 = vpop.permute.xlu0 %1884
        %1886 = vrot.lane.b32.xlu0 %v1000, 112
        %v1887 = vpop.permute.xlu0 %1886
        %1888 = vrot.lane.b32.xlu0 %v1001, 112
        %v1889 = vpop.permute.xlu0 %1888
        %1890 = vrot.lane.b32.xlu0 %v1002, 112
        %v1891 = vpop.permute.xlu0 %1890
        %1892 = vrot.lane.b32.xlu0 %v1003, 112
        %v1893 = vpop.permute.xlu0 %1892
        %1894 = vrot.lane.b32.xlu0 %v1004, 112
        %v1895 = vpop.permute.xlu0 %1894
        %1896 = vrot.lane.b32.xlu0 %v1005, 112
        %v1897 = vpop.permute.xlu0 %1896
        %1898 = vrot.lane.b32.xlu0 %v1006, 112
        %v1899 = vpop.permute.xlu0 %1898
        %1900 = vrot.lane.b32.xlu0 %v1007, 112
        %v1901 = vpop.permute.xlu0 %1900
        %1902 = vrot.lane.b32.xlu0 %v1008, 112
        %v1903 = vpop.permute.xlu0 %1902
        %1904 = vrot.lane.b32.xlu0 %v1009, 112
        %v1905 = vpop.permute.xlu0 %1904
        %v1938 = vsel %vm309, %v753, %v1075
        %v1939 = vsel %vm309, %v754, %v1077
        %v1940 = vsel %vm309, %v755, %v1079
        %v1941 = vsel %vm309, %v756, %v1081
        %v1942 = vsel %vm309, %v757, %v1083
        %v1943 = vsel %vm309, %v758, %v1085
        %v1944 = vsel %vm309, %v759, %v1087
        %v1945 = vsel %vm309, %v760, %v1089
        %v1946 = vsel %vm309, %v761, %v1091
        %v1947 = vsel %vm309, %v762, %v1093
        %v1948 = vsel %vm309, %v763, %v1095
        %v1949 = vsel %vm309, %v764, %v1097
        %v1950 = vsel %vm309, %v765, %v1099
        %v1951 = vsel %vm309, %v766, %v1101
        %v1952 = vsel %vm309, %v767, %v1103
        %v1953 = vsel %vm309, %v768, %v1105
        %v1954 = vsel %vm309, %v769, %v1107
        %v1955 = vsel %vm309, %v770, %v1109
        %v1956 = vsel %vm309, %v771, %v1111
        %v1957 = vsel %vm309, %v772, %v1113
        %v1958 = vsel %vm309, %v773, %v1115
        %v1959 = vsel %vm309, %v774, %v1117
        %v1960 = vsel %vm309, %v775, %v1119
        %v1961 = vsel %vm309, %v776, %v1121
        %v1962 = vsel %vm309, %v777, %v1123
        %v1963 = vsel %vm309, %v778, %v1125
        %v1964 = vsel %vm309, %v779, %v1127
        %v1965 = vsel %vm309, %v780, %v1129
        %v1966 = vsel %vm309, %v781, %v1131
        %v1967 = vsel %vm309, %v782, %v1133
        %v1968 = vsel %vm309, %v783, %v1135
        %v1969 = vsel %vm309, %v784, %v1137
        %vm1970 = vcmask 261120
        %v1971 = vsel %vm1970, %v1938, %v1203
        %v1972 = vsel %vm1970, %v1939, %v1205
        %v1973 = vsel %vm1970, %v1940, %v1207
        %v1974 = vsel %vm1970, %v1941, %v1209
        %v1975 = vsel %vm1970, %v1942, %v1211
        %v1976 = vsel %vm1970, %v1943, %v1213
        %v1977 = vsel %vm1970, %v1944, %v1215
        %v1978 = vsel %vm1970, %v1945, %v1217
        %v1979 = vsel %vm1970, %v1946, %v1219
        %v1980 = vsel %vm1970, %v1947, %v1221
        %v1981 = vsel %vm1970, %v1948, %v1223
        %v1982 = vsel %vm1970, %v1949, %v1225
        %v1983 = vsel %vm1970, %v1950, %v1227
        %v1984 = vsel %vm1970, %v1951, %v1229
        %v1985 = vsel %vm1970, %v1952, %v1231
        %v1986 = vsel %vm1970, %v1953, %v1233
        %v1987 = vsel %vm1970, %v1954, %v1235
        %v1988 = vsel %vm1970, %v1955, %v1237
        %v1989 = vsel %vm1970, %v1956, %v1239
        %v1990 = vsel %vm1970, %v1957, %v1241
        %v1991 = vsel %vm1970, %v1958, %v1243
        %v1992 = vsel %vm1970, %v1959, %v1245
        %v1993 = vsel %vm1970, %v1960, %v1247
        %v1994 = vsel %vm1970, %v1961, %v1249
        %v1995 = vsel %vm1970, %v1962, %v1251
        %v1996 = vsel %vm1970, %v1963, %v1253
        %v1997 = vsel %vm1970, %v1964, %v1255
        %v1998 = vsel %vm1970, %v1965, %v1257
        %v1999 = vsel %vm1970, %v1966, %v1259
        %v2000 = vsel %vm1970, %v1967, %v1261
        %v2001 = vsel %vm1970, %v1968, %v1263
        %v2002 = vsel %vm1970, %v1969, %v1265
        %vm2003 = vcmask 392192
        %v2004 = vsel %vm2003, %v1971, %v1331
        %v2005 = vsel %vm2003, %v1972, %v1333
        %v2006 = vsel %vm2003, %v1973, %v1335
        %v2007 = vsel %vm2003, %v1974, %v1337
        %v2008 = vsel %vm2003, %v1975, %v1339
        %v2009 = vsel %vm2003, %v1976, %v1341
        %v2010 = vsel %vm2003, %v1977, %v1343
        %v2011 = vsel %vm2003, %v1978, %v1345
        %v2012 = vsel %vm2003, %v1979, %v1347
        %v2013 = vsel %vm2003, %v1980, %v1349
        %v2014 = vsel %vm2003, %v1981, %v1351
        %v2015 = vsel %vm2003, %v1982, %v1353
        %v2016 = vsel %vm2003, %v1983, %v1355
        %v2017 = vsel %vm2003, %v1984, %v1357
        %v2018 = vsel %vm2003, %v1985, %v1359
        %v2019 = vsel %vm2003, %v1986, %v1361
        %v2020 = vsel %vm2003, %v1987, %v1363
        %v2021 = vsel %vm2003, %v1988, %v1365
        %v2022 = vsel %vm2003, %v1989, %v1367
        %v2023 = vsel %vm2003, %v1990, %v1369
        %v2024 = vsel %vm2003, %v1991, %v1371
        %v2025 = vsel %vm2003, %v1992, %v1373
        %v2026 = vsel %vm2003, %v1993, %v1375
        %v2027 = vsel %vm2003, %v1994, %v1377
        %v2028 = vsel %vm2003, %v1995, %v1379
        %v2029 = vsel %vm2003, %v1996, %v1381
        %v2030 = vsel %vm2003, %v1997, %v1383
        %v2031 = vsel %vm2003, %v1998, %v1385
        %v2032 = vsel %vm2003, %v1999, %v1387
        %v2033 = vsel %vm2003, %v2000, %v1389
        %v2034 = vsel %vm2003, %v2001, %v1391
        %v2035 = vsel %vm2003, %v2002, %v1393
        %v2036 = vsel %vm367, %v2004, %v1459
        %v2037 = vsel %vm367, %v2005, %v1461
        %v2038 = vsel %vm367, %v2006, %v1463
        %v2039 = vsel %vm367, %v2007, %v1465
        %v2040 = vsel %vm367, %v2008, %v1467
        %v2041 = vsel %vm367, %v2009, %v1469
        %v2042 = vsel %vm367, %v2010, %v1471
        %v2043 = vsel %vm367, %v2011, %v1473
        %v2044 = vsel %vm367, %v2012, %v1475
        %v2045 = vsel %vm367, %v2013, %v1477
        %v2046 = vsel %vm367, %v2014, %v1479
        %v2047 = vsel %vm367, %v2015, %v1481
        %v2048 = vsel %vm367, %v2016, %v1483
        %v2049 = vsel %vm367, %v2017, %v1485
        %v2050 = vsel %vm367, %v2018, %v1487
        %v2051 = vsel %vm367, %v2019, %v1489
        %v2052 = vsel %vm367, %v2020, %v1491
        %v2053 = vsel %vm367, %v2021, %v1493
        %v2054 = vsel %vm367, %v2022, %v1495
        %v2055 = vsel %vm367, %v2023, %v1497
        %v2056 = vsel %vm367, %v2024, %v1499
        %v2057 = vsel %vm367, %v2025, %v1501
        %v2058 = vsel %vm367, %v2026, %v1503
        %v2059 = vsel %vm367, %v2027, %v1505
        %v2060 = vsel %vm367, %v2028, %v1507
        %v2061 = vsel %vm367, %v2029, %v1509
        %v2062 = vsel %vm367, %v2030, %v1511
        %v2063 = vsel %vm367, %v2031, %v1513
        %v2064 = vsel %vm367, %v2032, %v1515
        %v2065 = vsel %vm367, %v2033, %v1517
        %v2066 = vsel %vm367, %v2034, %v1519
        %v2067 = vsel %vm367, %v2035, %v1521
        %vm2068 = vcmask 654336
        %v2069 = vsel %vm2068, %v2036, %v1587
        %v2070 = vsel %vm2068, %v2037, %v1589
        %v2071 = vsel %vm2068, %v2038, %v1591
        %v2072 = vsel %vm2068, %v2039, %v1593
        %v2073 = vsel %vm2068, %v2040, %v1595
        %v2074 = vsel %vm2068, %v2041, %v1597
        %v2075 = vsel %vm2068, %v2042, %v1599
        %v2076 = vsel %vm2068, %v2043, %v1601
        %v2077 = vsel %vm2068, %v2044, %v1603
        %v2078 = vsel %vm2068, %v2045, %v1605
        %v2079 = vsel %vm2068, %v2046, %v1607
        %v2080 = vsel %vm2068, %v2047, %v1609
        %v2081 = vsel %vm2068, %v2048, %v1611
        %v2082 = vsel %vm2068, %v2049, %v1613
        %v2083 = vsel %vm2068, %v2050, %v1615
        %v2084 = vsel %vm2068, %v2051, %v1617
        %v2085 = vsel %vm2068, %v2052, %v1619
        %v2086 = vsel %vm2068, %v2053, %v1621
        %v2087 = vsel %vm2068, %v2054, %v1623
        %v2088 = vsel %vm2068, %v2055, %v1625
        %v2089 = vsel %vm2068, %v2056, %v1627
        %v2090 = vsel %vm2068, %v2057, %v1629
        %v2091 = vsel %vm2068, %v2058, %v1631
        %v2092 = vsel %vm2068, %v2059, %v1633
        %v2093 = vsel %vm2068, %v2060, %v1635
        %v2094 = vsel %vm2068, %v2061, %v1637
        %v2095 = vsel %vm2068, %v2062, %v1639
        %v2096 = vsel %vm2068, %v2063, %v1641
        %v2097 = vsel %vm2068, %v2064, %v1643
        %v2098 = vsel %vm2068, %v2065, %v1645
        %v2099 = vsel %vm2068, %v2066, %v1647
        %v2100 = vsel %vm2068, %v2067, %v1649
        %vm2101 = vcmask 785408
        %v2102 = vsel %vm2101, %v2069, %v1715
        %v2103 = vsel %vm2101, %v2070, %v1717
        %v2104 = vsel %vm2101, %v2071, %v1719
        %v2105 = vsel %vm2101, %v2072, %v1721
        %v2106 = vsel %vm2101, %v2073, %v1723
        %v2107 = vsel %vm2101, %v2074, %v1725
        %v2108 = vsel %vm2101, %v2075, %v1727
        %v2109 = vsel %vm2101, %v2076, %v1729
        %v2110 = vsel %vm2101, %v2077, %v1731
        %v2111 = vsel %vm2101, %v2078, %v1733
        %v2112 = vsel %vm2101, %v2079, %v1735
        %v2113 = vsel %vm2101, %v2080, %v1737
        %v2114 = vsel %vm2101, %v2081, %v1739
        %v2115 = vsel %vm2101, %v2082, %v1741
        %v2116 = vsel %vm2101, %v2083, %v1743
        %v2117 = vsel %vm2101, %v2084, %v1745
        %v2118 = vsel %vm2101, %v2085, %v1747
        %v2119 = vsel %vm2101, %v2086, %v1749
        %v2120 = vsel %vm2101, %v2087, %v1751
        %v2121 = vsel %vm2101, %v2088, %v1753
        %v2122 = vsel %vm2101, %v2089, %v1755
        %v2123 = vsel %vm2101, %v2090, %v1757
        %v2124 = vsel %vm2101, %v2091, %v1759
        %v2125 = vsel %vm2101, %v2092, %v1761
        %v2126 = vsel %vm2101, %v2093, %v1763
        %v2127 = vsel %vm2101, %v2094, %v1765
        %v2128 = vsel %vm2101, %v2095, %v1767
        %v2129 = vsel %vm2101, %v2096, %v1769
        %v2130 = vsel %vm2101, %v2097, %v1771
        %v2131 = vsel %vm2101, %v2098, %v1773
        %v2132 = vsel %vm2101, %v2099, %v1775
        %v2133 = vsel %vm2101, %v2100, %v1777
        %vm2134 = vcmask 916480
        %v2135 = vsel %vm2134, %v2102, %v1843
        %v2136 = vsel %vm2134, %v2103, %v1845
        %v2137 = vsel %vm2134, %v2104, %v1847
        %v2138 = vsel %vm2134, %v2105, %v1849
        %v2139 = vsel %vm2134, %v2106, %v1851
        %v2140 = vsel %vm2134, %v2107, %v1853
        %v2141 = vsel %vm2134, %v2108, %v1855
        %v2142 = vsel %vm2134, %v2109, %v1857
        %v2143 = vsel %vm2134, %v2110, %v1859
        %v2144 = vsel %vm2134, %v2111, %v1861
        %v2145 = vsel %vm2134, %v2112, %v1863
        %v2146 = vsel %vm2134, %v2113, %v1865
        %v2147 = vsel %vm2134, %v2114, %v1867
        %v2148 = vsel %vm2134, %v2115, %v1869
        %v2149 = vsel %vm2134, %v2116, %v1871
        %v2150 = vsel %vm2134, %v2117, %v1873
        %v2151 = vsel %vm2134, %v2118, %v1875
        %v2152 = vsel %vm2134, %v2119, %v1877
        %v2153 = vsel %vm2134, %v2120, %v1879
        %v2154 = vsel %vm2134, %v2121, %v1881
        %v2155 = vsel %vm2134, %v2122, %v1883
        %v2156 = vsel %vm2134, %v2123, %v1885
        %v2157 = vsel %vm2134, %v2124, %v1887
        %v2158 = vsel %vm2134, %v2125, %v1889
        %v2159 = vsel %vm2134, %v2126, %v1891
        %v2160 = vsel %vm2134, %v2127, %v1893
        %v2161 = vsel %vm2134, %v2128, %v1895
        %v2162 = vsel %vm2134, %v2129, %v1897
        %v2163 = vsel %vm2134, %v2130, %v1899
        %v2164 = vsel %vm2134, %v2131, %v1901
        %v2165 = vsel %vm2134, %v2132, %v1903
        %v2166 = vsel %vm2134, %v2133, %v1905
        %v2167 = vld [vmem:[%s2] sm:$0xff]
        %v2168 = vld [vmem:[%s2 + $0x8] sm:$0xff]
        %v2169 = vld [vmem:[%s2 + $0x10] sm:$0xff]
        %v2170 = vld [vmem:[%s2 + $0x18] sm:$0xff]
        %v2171 = vld [vmem:[%s2 + $0x20] sm:$0xff]
        %v2172 = vld [vmem:[%s2 + $0x28] sm:$0xff]
        %v2173 = vld [vmem:[%s2 + $0x30] sm:$0xff]
        %v2174 = vld [vmem:[%s2 + $0x38] sm:$0xff]
        %v2175 = vld [vmem:[%s2 + $0x40] sm:$0xff]
        %v2176 = vld [vmem:[%s2 + $0x48] sm:$0xff]
        %v2177 = vld [vmem:[%s2 + $0x50] sm:$0xff]
        %v2178 = vld [vmem:[%s2 + $0x58] sm:$0xff]
        %v2179 = vld [vmem:[%s2 + $0x60] sm:$0xff]
        %v2180 = vld [vmem:[%s2 + $0x68] sm:$0xff]
        %v2181 = vld [vmem:[%s2 + $0x70] sm:$0xff]
        %v2182 = vld [vmem:[%s2 + $0x78] sm:$0xff]
        %v2183 = vld [vmem:[%s2 + $0x80] sm:$0xff]
        %v2184 = vld [vmem:[%s2 + $0x88] sm:$0xff]
        %v2185 = vld [vmem:[%s5] sm:$0x1]
        %v2187 = vlaneseq
        %v2188 = vshrl.u32 %v2187, 7
        %v2189 = vsub.s32 0, %v2188
        %v2190 = vrot.slane %v2185, %v2189
        %v2193 = vsel %vm309, %v1010, 0
        %v2196 = vsel %vm309, %v1011, 0
        %v2199 = vsel %vm309, %v1012, 0
        %v2202 = vsel %vm309, %v1013, 0
        %v2205 = vsel %vm309, %v1014, 0
        %v2208 = vsel %vm309, %v1015, 0
        %v2211 = vsel %vm309, %v1016, 0
        %v2214 = vsel %vm309, %v1017, 0
        %v2217 = vsel %vm309, %v1018, 0
        %v2220 = vsel %vm309, %v1019, 0
        %v2223 = vsel %vm309, %v1020, 0
        %v2226 = vsel %vm309, %v1021, 0
        %v2229 = vsel %vm309, %v1022, 0
        %v2232 = vsel %vm309, %v1023, 0
        %v2235 = vsel %vm309, %v1024, 0
        %v2238 = vsel %vm309, %v1025, 0
        %v2241 = vsel %vm309, %v1026, 0
        %v2244 = vsel %vm309, %v1027, 0
        %v2247 = vsel %vm309, %v1028, 0
        %v2250 = vsel %vm309, %v1029, 0
        %v2253 = vsel %vm309, %v1030, 0
        %v2256 = vsel %vm309, %v1031, 0
        %v2259 = vsel %vm309, %v1032, 0
        %v2262 = vsel %vm309, %v1033, 0
        %v2265 = vsel %vm309, %v1034, 0
        %v2268 = vsel %vm309, %v1035, 0
        %v2271 = vsel %vm309, %v1036, 0
        %v2274 = vsel %vm309, %v1037, 0
        %v2277 = vsel %vm309, %v1038, 0
        %v2280 = vsel %vm309, %v1039, 0
        %v2283 = vsel %vm309, %v1040, 0
        %v2286 = vsel %vm309, %v1041, 0
        %2288 = vmatprep.subr.mxu0 0.0
        %2289 = vmatpush1.msra.mxu0 %v2167
        %2290 = vmatprep.subr.mxu0 0.0
        %2291 = vmatpush1.msra.mxu0 %v2168
        %2292 = vmatprep.subr.mxu0 0.0
        %2293 = vmatpush1.msra.mxu0 %v2169
        %2294 = vmatprep.subr.mxu0 0.0
        %2295 = vmatpush1.msra.mxu0 %v2170
        %2296 = vmatprep.subr.mxu0 0.0
        %2297 = vmatpush1.msra.mxu0 %v2171
        %2298 = vmatprep.subr.mxu0 0.0
        %2299 = vmatpush1.msra.mxu0 %v2172
        %2300 = vmatprep.subr.mxu0 0.0
        %2301 = vmatpush1.msra.mxu0 %v2173
        %2302 = vmatprep.subr.mxu0 0.0
        %2303 = vmatpush1.msra.mxu0 %v2174
        %2304 = vmatprep.subr.mxu0 0.0
        %2305 = vmatpush1.msra.mxu0 %v2175
        %2306 = vmatprep.subr.mxu0 0.0
        %2307 = vmatpush1.msra.mxu0 %v2176
        %2308 = vmatprep.subr.mxu0 0.0
        %2309 = vmatpush1.msra.mxu0 %v2177
        %2310 = vmatprep.subr.mxu0 0.0
        %2311 = vmatpush1.msra.mxu0 %v2178
        %2312 = vmatprep.subr.mxu0 0.0
        %2313 = vmatpush1.msra.mxu0 %v2179
        %2314 = vmatprep.subr.mxu0 0.0
        %2315 = vmatpush1.msra.mxu0 %v2180
        %2316 = vmatprep.subr.mxu0 0.0
        %2317 = vmatpush1.msra.mxu0 %v2181
        %2318 = vmatprep.subr.mxu0 0.0
        %2319 = vmatpush1.msra.mxu0 %v2182
        %2320 = vmatprep.subr.mxu0 0.0
        %2321 = vmatpush1.msra.mxu0 %v2183
        %2322 = vmatprep.subr.mxu0 0.0
        %2323 = vmatpush1.msra.mxu0 %v2184
        %2324 = vmatprep.subr.mxu0 0.0
        %2325 = vmatpush1.msra.mxu0 0.0
        %2326 = vmatprep.subr.mxu0 0.0
        %2327 = vmatpush1.msra.mxu0 0.0
        %2328 = vmatprep.subr.mxu0 0.0
        %2329 = vmatpush1.msra.mxu0 0.0
        %2330 = vmatprep.subr.mxu0 0.0
        %2331 = vmatpush1.msra.mxu0 0.0
        %2332 = vmatprep.subr.mxu0 0.0
        %2333 = vmatpush1.msra.mxu0 0.0
        %2334 = vmatprep.subr.mxu0 0.0
        %2335 = vmatpush1.msra.mxu0 0.0
        %2336 = vmatprep.subr.mxu0 0.0
        %2337 = vmatpush1.msra.mxu0 0.0
        %2338 = vmatprep.subr.mxu0 0.0
        %2339 = vmatpush1.msra.mxu0 0.0
        %2340 = vmatprep.subr.mxu0 0.0
        %2341 = vmatpush1.msra.mxu0 0.0
        %2342 = vmatprep.subr.mxu0 0.0
        %2343 = vmatpush1.msra.mxu0 0.0
        %2344 = vmatprep.subr.mxu0 0.0
        %2345 = vmatpush1.msra.mxu0 0.0
        %2346 = vmatprep.subr.mxu0 0.0
        %2347 = vmatpush1.msra.mxu0 0.0
        %2348 = vmatprep.subr.mxu0 0.0
        %2349 = vmatpush1.msra.mxu0 0.0
        %2350 = vmatprep.subr.mxu0 0.0
        %2351 = vmatpush1.msra.mxu0 0.0
        %2352 = vmatprep.mubr.f32.mxu0 %v2193
        %2353 = vmatmul.mubr.f32.gmra.mrb[0].mxu0 %v2135
        %v2354 = vpop.f32.mrb[0].mxu0
        %v2355 = vadd.f32 %v2190, %v2354
        %v2356 = vpop.f32.mrb[0].mxu0
        %2357 = vmatprep.mubr.f32.mxu0 %v2196
        %2358 = vmatmul.mubr.f32.gmra.mrb[0].mxu0 %v2136
        %v2359 = vpop.f32.mrb[0].mxu0
        %v2360 = vadd.f32 %v2190, %v2359
        %v2361 = vpop.f32.mrb[0].mxu0
        %2362 = vmatprep.mubr.f32.mxu0 %v2199
        %2363 = vmatmul.mubr.f32.gmra.mrb[0].mxu0 %v2137
        %v2364 = vpop.f32.mrb[0].mxu0
        %v2365 = vadd.f32 %v2190, %v2364
        %v2366 = vpop.f32.mrb[0].mxu0
        %2367 = vmatprep.mubr.f32.mxu0 %v2202
        %2368 = vmatmul.mubr.f32.gmra.mrb[0].mxu0 %v2138
        %v2369 = vpop.f32.mrb[0].mxu0
        %v2370 = vadd.f32 %v2190, %v2369
        %v2371 = vpop.f32.mrb[0].mxu0
        %2372 = vmatprep.mubr.f32.mxu0 %v2205
        %2373 = vmatmul.mubr.f32.gmra.mrb[0].mxu0 %v2139
        %v2374 = vpop.f32.mrb[0].mxu0
        %v2375 = vadd.f32 %v2190, %v2374
        %v2376 = vpop.f32.mrb[0].mxu0
        %2377 = vmatprep.mubr.f32.mxu0 %v2208
        %2378 = vmatmul.mubr.f32.gmra.mrb[0].mxu0 %v2140
        %v2379 = vpop.f32.mrb[0].mxu0
        %v2380 = vadd.f32 %v2190, %v2379
        %v2381 = vpop.f32.mrb[0].mxu0
        %2382 = vmatprep.mubr.f32.mxu0 %v2211
        %2383 = vmatmul.mubr.f32.gmra.mrb[0].mxu0 %v2141
        %v2384 = vpop.f32.mrb[0].mxu0
        %v2385 = vadd.f32 %v2190, %v2384
        %v2386 = vpop.f32.mrb[0].mxu0
        %2387 = vmatprep.mubr.f32.mxu0 %v2214
        %2388 = vmatmul.mubr.f32.gmra.mrb[0].mxu0 %v2142
        %v2389 = vpop.f32.mrb[0].mxu0
        %v2390 = vadd.f32 %v2190, %v2389
        %v2391 = vpop.f32.mrb[0].mxu0
        %2392 = vmatprep.mubr.f32.mxu0 %v2217
        %2393 = vmatmul.mubr.f32.gmra.mrb[0].mxu0 %v2143
        %v2394 = vpop.f32.mrb[0].mxu0
        %v2395 = vadd.f32 %v2190, %v2394
        %v2396 = vpop.f32.mrb[0].mxu0
        %2397 = vmatprep.mubr.f32.mxu0 %v2220
        %2398 = vmatmul.mubr.f32.gmra.mrb[0].mxu0 %v2144
        %v2399 = vpop.f32.mrb[0].mxu0
        %v2400 = vadd.f32 %v2190, %v2399
        %v2401 = vpop.f32.mrb[0].mxu0
        %2402 = vmatprep.mubr.f32.mxu0 %v2223
        %2403 = vmatmul.mubr.f32.gmra.mrb[0].mxu0 %v2145
        %v2404 = vpop.f32.mrb[0].mxu0
        %v2405 = vadd.f32 %v2190, %v2404
        %v2406 = vpop.f32.mrb[0].mxu0
        %2407 = vmatprep.mubr.f32.mxu0 %v2226
        %2408 = vmatmul.mubr.f32.gmra.mrb[0].mxu0 %v2146
        %v2409 = vpop.f32.mrb[0].mxu0
        %v2410 = vadd.f32 %v2190, %v2409
        %v2411 = vpop.f32.mrb[0].mxu0
        %2412 = vmatprep.mubr.f32.mxu0 %v2229
        %2413 = vmatmul.mubr.f32.gmra.mrb[0].mxu0 %v2147
        %v2414 = vpop.f32.mrb[0].mxu0
        %v2415 = vadd.f32 %v2190, %v2414
        %v2416 = vpop.f32.mrb[0].mxu0
        %2417 = vmatprep.mubr.f32.mxu0 %v2232
        %2418 = vmatmul.mubr.f32.gmra.mrb[0].mxu0 %v2148
        %v2419 = vpop.f32.mrb[0].mxu0
        %v2420 = vadd.f32 %v2190, %v2419
        %v2421 = vpop.f32.mrb[0].mxu0
        %2422 = vmatprep.mubr.f32.mxu0 %v2235
        %2423 = vmatmul.mubr.f32.gmra.mrb[0].mxu0 %v2149
        %v2424 = vpop.f32.mrb[0].mxu0
        %v2425 = vadd.f32 %v2190, %v2424
        %v2426 = vpop.f32.mrb[0].mxu0
        %2427 = vmatprep.mubr.f32.mxu0 %v2238
        %2428 = vmatmul.mubr.f32.gmra.mrb[0].mxu0 %v2150
        %v2429 = vpop.f32.mrb[0].mxu0
        %v2430 = vadd.f32 %v2190, %v2429
        %v2431 = vpop.f32.mrb[0].mxu0
        %2432 = vmatprep.mubr.f32.mxu0 %v2241
        %2433 = vmatmul.mubr.f32.gmra.mrb[0].mxu0 %v2151
        %v2434 = vpop.f32.mrb[0].mxu0
        %v2435 = vadd.f32 %v2190, %v2434
        %v2436 = vpop.f32.mrb[0].mxu0
        %2437 = vmatprep.mubr.f32.mxu0 %v2244
        %2438 = vmatmul.mubr.f32.gmra.mrb[0].mxu0 %v2152
        %v2439 = vpop.f32.mrb[0].mxu0
        %v2440 = vadd.f32 %v2190, %v2439
        %v2441 = vpop.f32.mrb[0].mxu0
        %2442 = vmatprep.mubr.f32.mxu0 %v2247
        %2443 = vmatmul.mubr.f32.gmra.mrb[0].mxu0 %v2153
        %v2444 = vpop.f32.mrb[0].mxu0
        %v2445 = vadd.f32 %v2190, %v2444
        %v2446 = vpop.f32.mrb[0].mxu0
        %2447 = vmatprep.mubr.f32.mxu0 %v2250
        %2448 = vmatmul.mubr.f32.gmra.mrb[0].mxu0 %v2154
        %v2449 = vpop.f32.mrb[0].mxu0
        %v2450 = vadd.f32 %v2190, %v2449
        %v2451 = vpop.f32.mrb[0].mxu0
        %2452 = vmatprep.mubr.f32.mxu0 %v2253
        %2453 = vmatmul.mubr.f32.gmra.mrb[0].mxu0 %v2155
        %v2454 = vpop.f32.mrb[0].mxu0
        %v2455 = vadd.f32 %v2190, %v2454
        %v2456 = vpop.f32.mrb[0].mxu0
        %2457 = vmatprep.mubr.f32.mxu0 %v2256
        %2458 = vmatmul.mubr.f32.gmra.mrb[0].mxu0 %v2156
        %v2459 = vpop.f32.mrb[0].mxu0
        %v2460 = vadd.f32 %v2190, %v2459
        %v2461 = vpop.f32.mrb[0].mxu0
        %2462 = vmatprep.mubr.f32.mxu0 %v2259
        %2463 = vmatmul.mubr.f32.gmra.mrb[0].mxu0 %v2157
        %v2464 = vpop.f32.mrb[0].mxu0
        %v2465 = vadd.f32 %v2190, %v2464
        %v2466 = vpop.f32.mrb[0].mxu0
        %2467 = vmatprep.mubr.f32.mxu0 %v2262
        %2468 = vmatmul.mubr.f32.gmra.mrb[0].mxu0 %v2158
        %v2469 = vpop.f32.mrb[0].mxu0
        %v2470 = vadd.f32 %v2190, %v2469
        %v2471 = vpop.f32.mrb[0].mxu0
        %2472 = vmatprep.mubr.f32.mxu0 %v2265
        %2473 = vmatmul.mubr.f32.gmra.mrb[0].mxu0 %v2159
        %v2474 = vpop.f32.mrb[0].mxu0
        %v2475 = vadd.f32 %v2190, %v2474
        %v2476 = vpop.f32.mrb[0].mxu0
        %2477 = vmatprep.mubr.f32.mxu0 %v2268
        %2478 = vmatmul.mubr.f32.gmra.mrb[0].mxu0 %v2160
        %v2479 = vpop.f32.mrb[0].mxu0
        %v2480 = vadd.f32 %v2190, %v2479
        %v2481 = vpop.f32.mrb[0].mxu0
        %2482 = vmatprep.mubr.f32.mxu0 %v2271
        %2483 = vmatmul.mubr.f32.gmra.mrb[0].mxu0 %v2161
        %v2484 = vpop.f32.mrb[0].mxu0
        %v2485 = vadd.f32 %v2190, %v2484
        %v2486 = vpop.f32.mrb[0].mxu0
        %2487 = vmatprep.mubr.f32.mxu0 %v2274
        %2488 = vmatmul.mubr.f32.gmra.mrb[0].mxu0 %v2162
        %v2489 = vpop.f32.mrb[0].mxu0
        %v2490 = vadd.f32 %v2190, %v2489
        %v2491 = vpop.f32.mrb[0].mxu0
        %2492 = vmatprep.mubr.f32.mxu0 %v2277
        %2493 = vmatmul.mubr.f32.gmra.mrb[0].mxu0 %v2163
        %v2494 = vpop.f32.mrb[0].mxu0
        %v2495 = vadd.f32 %v2190, %v2494
        %v2496 = vpop.f32.mrb[0].mxu0
        %2497 = vmatprep.mubr.f32.mxu0 %v2280
        %2498 = vmatmul.mubr.f32.gmra.mrb[0].mxu0 %v2164
        %v2499 = vpop.f32.mrb[0].mxu0
        %v2500 = vadd.f32 %v2190, %v2499
        %v2501 = vpop.f32.mrb[0].mxu0
        %2502 = vmatprep.mubr.f32.mxu0 %v2283
        %2503 = vmatmul.mubr.f32.gmra.mrb[0].mxu0 %v2165
        %v2504 = vpop.f32.mrb[0].mxu0
        %v2505 = vadd.f32 %v2190, %v2504
        %v2506 = vpop.f32.mrb[0].mxu0
        %2507 = vmatprep.mubr.f32.mxu0 %v2286
        %2508 = vmatmul.mubr.f32.gmra.mrb[0].mxu0 %v2166
        %v2509 = vpop.f32.mrb[0].mxu0
        %v2510 = vadd.f32 %v2190, %v2509
        %v2511 = vpop.f32.mrb[0].mxu0
        %2512 = vdwg.mxu0
        %v2513 = vmax.f32 %v2355, 0.0
        %v2514 = vmax.f32 %v2360, 0.0
        %v2515 = vmax.f32 %v2365, 0.0
        %v2516 = vmax.f32 %v2370, 0.0
        %v2517 = vmax.f32 %v2375, 0.0
        %v2518 = vmax.f32 %v2380, 0.0
        %v2519 = vmax.f32 %v2385, 0.0
        %v2520 = vmax.f32 %v2390, 0.0
        %v2521 = vmax.f32 %v2395, 0.0
        %v2522 = vmax.f32 %v2400, 0.0
        %v2523 = vmax.f32 %v2405, 0.0
        %v2524 = vmax.f32 %v2410, 0.0
        %v2525 = vmax.f32 %v2415, 0.0
        %v2526 = vmax.f32 %v2420, 0.0
        %v2527 = vmax.f32 %v2425, 0.0
        %v2528 = vmax.f32 %v2430, 0.0
        %v2529 = vmax.f32 %v2435, 0.0
        %v2530 = vmax.f32 %v2440, 0.0
        %v2531 = vmax.f32 %v2445, 0.0
        %v2532 = vmax.f32 %v2450, 0.0
        %v2533 = vmax.f32 %v2455, 0.0
        %v2534 = vmax.f32 %v2460, 0.0
        %v2535 = vmax.f32 %v2465, 0.0
        %v2536 = vmax.f32 %v2470, 0.0
        %v2537 = vmax.f32 %v2475, 0.0
        %v2538 = vmax.f32 %v2480, 0.0
        %v2539 = vmax.f32 %v2485, 0.0
        %v2540 = vmax.f32 %v2490, 0.0
        %v2541 = vmax.f32 %v2495, 0.0
        %v2542 = vmax.f32 %v2500, 0.0
        %v2543 = vmax.f32 %v2505, 0.0
        %v2544 = vmax.f32 %v2510, 0.0
        %v2545 = vld [vmem:[%s3] sm:$0xff]
        %v2546 = vld [vmem:[%s3 + $0x8] sm:$0xff]
        %v2547 = vld [vmem:[%s6] sm:$0x1]
        %v2549 = vlaneseq
        %v2550 = vshrl.u32 %v2549, 7
        %v2551 = vsub.s32 0, %v2550
        %v2552 = vrot.slane %v2547, %v2551
        %v2555 = vsel %vm309, %v2513, 0
        %v2558 = vsel %vm309, %v2514, 0
        %v2561 = vsel %vm309, %v2515, 0
        %v2564 = vsel %vm309, %v2516, 0
        %v2567 = vsel %vm309, %v2517, 0
        %v2570 = vsel %vm309, %v2518, 0
        %v2573 = vsel %vm309, %v2519, 0
        %v2576 = vsel %vm309, %v2520, 0
        %v2579 = vsel %vm309, %v2521, 0
        %v2582 = vsel %vm309, %v2522, 0
        %v2585 = vsel %vm309, %v2523, 0
        %v2588 = vsel %vm309, %v2524, 0
        %v2591 = vsel %vm309, %v2525, 0
        %v2594 = vsel %vm309, %v2526, 0
        %v2597 = vsel %vm309, %v2527, 0
        %v2600 = vsel %vm309, %v2528, 0
        %v2603 = vsel %vm309, %v2529, 0
        %v2606 = vsel %vm309, %v2530, 0
        %v2609 = vsel %vm309, %v2531, 0
        %v2612 = vsel %vm309, %v2532, 0
        %v2615 = vsel %vm309, %v2533, 0
        %v2618 = vsel %vm309, %v2534, 0
        %v2621 = vsel %vm309, %v2535, 0
        %v2624 = vsel %vm309, %v2536, 0
        %v2627 = vsel %vm309, %v2537, 0
        %v2630 = vsel %vm309, %v2538, 0
        %v2633 = vsel %vm309, %v2539, 0
        %v2636 = vsel %vm309, %v2540, 0
        %v2639 = vsel %vm309, %v2541, 0
        %v2642 = vsel %vm309, %v2542, 0
        %v2645 = vsel %vm309, %v2543, 0
        %v2648 = vsel %vm309, %v2544, 0
        %2650 = vmatprep.subr.mxu0 0.0
        %2651 = vmatpush1.msra.mxu0 %v2545
        %2652 = vmatprep.subr.mxu0 0.0
        %2653 = vmatpush1.msra.mxu0 %v2546
        %2654 = vmatprep.subr.mxu0 0.0
        %2655 = vmatpush1.msra.mxu0 0.0
        %2656 = vmatprep.subr.mxu0 0.0
        %2657 = vmatpush1.msra.mxu0 0.0
        %2658 = vmatprep.subr.mxu0 0.0
        %2659 = vmatpush1.msra.mxu0 0.0
        %2660 = vmatprep.subr.mxu0 0.0
        %2661 = vmatpush1.msra.mxu0 0.0
        %2662 = vmatprep.subr.mxu0 0.0
        %2663 = vmatpush1.msra.mxu0 0.0
        %2664 = vmatprep.subr.mxu0 0.0
        %2665 = vmatpush1.msra.mxu0 0.0
        %2666 = vmatprep.subr.mxu0 0.0
        %2667 = vmatpush1.msra.mxu0 0.0
        %2668 = vmatprep.subr.mxu0 0.0
        %2669 = vmatpush1.msra.mxu0 0.0
        %2670 = vmatprep.subr.mxu0 0.0
        %2671 = vmatpush1.msra.mxu0 0.0
        %2672 = vmatprep.subr.mxu0 0.0
        %2673 = vmatpush1.msra.mxu0 0.0
        %2674 = vmatprep.subr.mxu0 0.0
        %2675 = vmatpush1.msra.mxu0 0.0
        %2676 = vmatprep.subr.mxu0 0.0
        %2677 = vmatpush1.msra.mxu0 0.0
        %2678 = vmatprep.subr.mxu0 0.0
        %2679 = vmatpush1.msra.mxu0 0.0
        %2680 = vmatprep.subr.mxu0 0.0
        %2681 = vmatpush1.msra.mxu0 0.0
        %2682 = vmatprep.subr.mxu0 0.0
        %2683 = vmatpush1.msra.mxu0 0.0
        %2684 = vmatprep.subr.mxu0 0.0
        %2685 = vmatpush1.msra.mxu0 0.0
        %2686 = vmatprep.subr.mxu0 0.0
        %2687 = vmatpush1.msra.mxu0 0.0
        %2688 = vmatprep.subr.mxu0 0.0
        %2689 = vmatpush1.msra.mxu0 0.0
        %2690 = vmatprep.subr.mxu0 0.0
        %2691 = vmatpush1.msra.mxu0 0.0
        %2692 = vmatprep.subr.mxu0 0.0
        %2693 = vmatpush1.msra.mxu0 0.0
        %2694 = vmatprep.subr.mxu0 0.0
        %2695 = vmatpush1.msra.mxu0 0.0
        %2696 = vmatprep.subr.mxu0 0.0
        %2697 = vmatpush1.msra.mxu0 0.0
        %2698 = vmatprep.subr.mxu0 0.0
        %2699 = vmatpush1.msra.mxu0 0.0
        %2700 = vmatprep.subr.mxu0 0.0
        %2701 = vmatpush1.msra.mxu0 0.0
        %2702 = vmatprep.subr.mxu0 0.0
        %2703 = vmatpush1.msra.mxu0 0.0
        %2704 = vmatprep.subr.mxu0 0.0
        %2705 = vmatpush1.msra.mxu0 0.0
        %2706 = vmatprep.subr.mxu0 0.0
        %2707 = vmatpush1.msra.mxu0 0.0
        %2708 = vmatprep.subr.mxu0 0.0
        %2709 = vmatpush1.msra.mxu0 0.0
        %2710 = vmatprep.subr.mxu0 0.0
        %2711 = vmatpush1.msra.mxu0 0.0
        %2712 = vmatprep.subr.mxu0 0.0
        %2713 = vmatpush1.msra.mxu0 0.0
        %2714 = vmatprep.mubr.f32.mxu0 0.0
        %2715 = vmatmul.mubr.f32.gmra.mrb[0].mxu0 %v2555
        %v2716 = vpop.f32.mrb[0].mxu0
        %v2717 = vadd.f32 %v2552, %v2716
        %v2718 = vpop.f32.mrb[0].mxu0
        %2719 = vmatprep.mubr.f32.mxu0 0.0
        %2720 = vmatmul.mubr.f32.gmra.mrb[0].mxu0 %v2558
        %v2721 = vpop.f32.mrb[0].mxu0
        %v2722 = vadd.f32 %v2552, %v2721
        %v2723 = vpop.f32.mrb[0].mxu0
        %2724 = vmatprep.mubr.f32.mxu0 0.0
        %2725 = vmatmul.mubr.f32.gmra.mrb[0].mxu0 %v2561
        %v2726 = vpop.f32.mrb[0].mxu0
        %v2727 = vadd.f32 %v2552, %v2726
        %v2728 = vpop.f32.mrb[0].mxu0
        %2729 = vmatprep.mubr.f32.mxu0 0.0
        %2730 = vmatmul.mubr.f32.gmra.mrb[0].mxu0 %v2564
        %v2731 = vpop.f32.mrb[0].mxu0
        %v2732 = vadd.f32 %v2552, %v2731
        %v2733 = vpop.f32.mrb[0].mxu0
        %2734 = vmatprep.mubr.f32.mxu0 0.0
        %2735 = vmatmul.mubr.f32.gmra.mrb[0].mxu0 %v2567
        %v2736 = vpop.f32.mrb[0].mxu0
        %v2737 = vadd.f32 %v2552, %v2736
        %v2738 = vpop.f32.mrb[0].mxu0
        %2739 = vmatprep.mubr.f32.mxu0 0.0
        %2740 = vmatmul.mubr.f32.gmra.mrb[0].mxu0 %v2570
        %v2741 = vpop.f32.mrb[0].mxu0
        %v2742 = vadd.f32 %v2552, %v2741
        %v2743 = vpop.f32.mrb[0].mxu0
        %2744 = vmatprep.mubr.f32.mxu0 0.0
        %2745 = vmatmul.mubr.f32.gmra.mrb[0].mxu0 %v2573
        %v2746 = vpop.f32.mrb[0].mxu0
        %v2747 = vadd.f32 %v2552, %v2746
        %v2748 = vpop.f32.mrb[0].mxu0
        %2749 = vmatprep.mubr.f32.mxu0 0.0
        %2750 = vmatmul.mubr.f32.gmra.mrb[0].mxu0 %v2576
        %v2751 = vpop.f32.mrb[0].mxu0
        %v2752 = vadd.f32 %v2552, %v2751
        %v2753 = vpop.f32.mrb[0].mxu0
        %2754 = vmatprep.mubr.f32.mxu0 0.0
        %2755 = vmatmul.mubr.f32.gmra.mrb[0].mxu0 %v2579
        %v2756 = vpop.f32.mrb[0].mxu0
        %v2757 = vadd.f32 %v2552, %v2756
        %v2758 = vpop.f32.mrb[0].mxu0
        %2759 = vmatprep.mubr.f32.mxu0 0.0
        %2760 = vmatmul.mubr.f32.gmra.mrb[0].mxu0 %v2582
        %v2761 = vpop.f32.mrb[0].mxu0
        %v2762 = vadd.f32 %v2552, %v2761
        %v2763 = vpop.f32.mrb[0].mxu0
        %2764 = vmatprep.mubr.f32.mxu0 0.0
        %2765 = vmatmul.mubr.f32.gmra.mrb[0].mxu0 %v2585
        %v2766 = vpop.f32.mrb[0].mxu0
        %v2767 = vadd.f32 %v2552, %v2766
        %v2768 = vpop.f32.mrb[0].mxu0
        %2769 = vmatprep.mubr.f32.mxu0 0.0
        %2770 = vmatmul.mubr.f32.gmra.mrb[0].mxu0 %v2588
        %v2771 = vpop.f32.mrb[0].mxu0
        %v2772 = vadd.f32 %v2552, %v2771
        %v2773 = vpop.f32.mrb[0].mxu0
        %2774 = vmatprep.mubr.f32.mxu0 0.0
        %2775 = vmatmul.mubr.f32.gmra.mrb[0].mxu0 %v2591
        %v2776 = vpop.f32.mrb[0].mxu0
        %v2777 = vadd.f32 %v2552, %v2776
        %v2778 = vpop.f32.mrb[0].mxu0
        %2779 = vmatprep.mubr.f32.mxu0 0.0
        %2780 = vmatmul.mubr.f32.gmra.mrb[0].mxu0 %v2594
        %v2781 = vpop.f32.mrb[0].mxu0
        %v2782 = vadd.f32 %v2552, %v2781
        %v2783 = vpop.f32.mrb[0].mxu0
        %2784 = vmatprep.mubr.f32.mxu0 0.0
        %2785 = vmatmul.mubr.f32.gmra.mrb[0].mxu0 %v2597
        %v2786 = vpop.f32.mrb[0].mxu0
        %v2787 = vadd.f32 %v2552, %v2786
        %v2788 = vpop.f32.mrb[0].mxu0
        %2789 = vmatprep.mubr.f32.mxu0 0.0
        %2790 = vmatmul.mubr.f32.gmra.mrb[0].mxu0 %v2600
        %v2791 = vpop.f32.mrb[0].mxu0
        %v2792 = vadd.f32 %v2552, %v2791
        %v2793 = vpop.f32.mrb[0].mxu0
        %2794 = vmatprep.mubr.f32.mxu0 0.0
        %2795 = vmatmul.mubr.f32.gmra.mrb[0].mxu0 %v2603
        %v2796 = vpop.f32.mrb[0].mxu0
        %v2797 = vadd.f32 %v2552, %v2796
        %v2798 = vpop.f32.mrb[0].mxu0
        %2799 = vmatprep.mubr.f32.mxu0 0.0
        %2800 = vmatmul.mubr.f32.gmra.mrb[0].mxu0 %v2606
        %v2801 = vpop.f32.mrb[0].mxu0
        %v2802 = vadd.f32 %v2552, %v2801
        %v2803 = vpop.f32.mrb[0].mxu0
        %2804 = vmatprep.mubr.f32.mxu0 0.0
        %2805 = vmatmul.mubr.f32.gmra.mrb[0].mxu0 %v2609
        %v2806 = vpop.f32.mrb[0].mxu0
        %v2807 = vadd.f32 %v2552, %v2806
        %v2808 = vpop.f32.mrb[0].mxu0
        %2809 = vmatprep.mubr.f32.mxu0 0.0
        %2810 = vmatmul.mubr.f32.gmra.mrb[0].mxu0 %v2612
        %v2811 = vpop.f32.mrb[0].mxu0
        %v2812 = vadd.f32 %v2552, %v2811
        %v2813 = vpop.f32.mrb[0].mxu0
        %2814 = vmatprep.mubr.f32.mxu0 0.0
        %2815 = vmatmul.mubr.f32.gmra.mrb[0].mxu0 %v2615
        %v2816 = vpop.f32.mrb[0].mxu0
        %v2817 = vadd.f32 %v2552, %v2816
        %v2818 = vpop.f32.mrb[0].mxu0
        %2819 = vmatprep.mubr.f32.mxu0 0.0
        %2820 = vmatmul.mubr.f32.gmra.mrb[0].mxu0 %v2618
        %v2821 = vpop.f32.mrb[0].mxu0
        %v2822 = vadd.f32 %v2552, %v2821
        %v2823 = vpop.f32.mrb[0].mxu0
        %2824 = vmatprep.mubr.f32.mxu0 0.0
        %2825 = vmatmul.mubr.f32.gmra.mrb[0].mxu0 %v2621
        %v2826 = vpop.f32.mrb[0].mxu0
        %v2827 = vadd.f32 %v2552, %v2826
        %v2828 = vpop.f32.mrb[0].mxu0
        %2829 = vmatprep.mubr.f32.mxu0 0.0
        %2830 = vmatmul.mubr.f32.gmra.mrb[0].mxu0 %v2624
        %v2831 = vpop.f32.mrb[0].mxu0
        %v2832 = vadd.f32 %v2552, %v2831
        %v2833 = vpop.f32.mrb[0].mxu0
        %2834 = vmatprep.mubr.f32.mxu0 0.0
        %2835 = vmatmul.mubr.f32.gmra.mrb[0].mxu0 %v2627
        %v2836 = vpop.f32.mrb[0].mxu0
        %v2837 = vadd.f32 %v2552, %v2836
        %v2838 = vpop.f32.mrb[0].mxu0
        %2839 = vmatprep.mubr.f32.mxu0 0.0
        %2840 = vmatmul.mubr.f32.gmra.mrb[0].mxu0 %v2630
        %v2841 = vpop.f32.mrb[0].mxu0
        %v2842 = vadd.f32 %v2552, %v2841
        %v2843 = vpop.f32.mrb[0].mxu0
        %2844 = vmatprep.mubr.f32.mxu0 0.0
        %2845 = vmatmul.mubr.f32.gmra.mrb[0].mxu0 %v2633
        %v2846 = vpop.f32.mrb[0].mxu0
        %v2847 = vadd.f32 %v2552, %v2846
        %v2848 = vpop.f32.mrb[0].mxu0
        %2849 = vmatprep.mubr.f32.mxu0 0.0
        %2850 = vmatmul.mubr.f32.gmra.mrb[0].mxu0 %v2636
        %v2851 = vpop.f32.mrb[0].mxu0
        %v2852 = vadd.f32 %v2552, %v2851
        %v2853 = vpop.f32.mrb[0].mxu0
        %2854 = vmatprep.mubr.f32.mxu0 0.0
        %2855 = vmatmul.mubr.f32.gmra.mrb[0].mxu0 %v2639
        %v2856 = vpop.f32.mrb[0].mxu0
        %v2857 = vadd.f32 %v2552, %v2856
        %v2858 = vpop.f32.mrb[0].mxu0
        %2859 = vmatprep.mubr.f32.mxu0 0.0
        %2860 = vmatmul.mubr.f32.gmra.mrb[0].mxu0 %v2642
        %v2861 = vpop.f32.mrb[0].mxu0
        %v2862 = vadd.f32 %v2552, %v2861
        %v2863 = vpop.f32.mrb[0].mxu0
        %2864 = vmatprep.mubr.f32.mxu0 0.0
        %2865 = vmatmul.mubr.f32.gmra.mrb[0].mxu0 %v2645
        %v2866 = vpop.f32.mrb[0].mxu0
        %v2867 = vadd.f32 %v2552, %v2866
        %v2868 = vpop.f32.mrb[0].mxu0
        %2869 = vmatprep.mubr.f32.mxu0 0.0
        %2870 = vmatmul.mubr.f32.gmra.mrb[0].mxu0 %v2648
        %v2871 = vpop.f32.mrb[0].mxu0
        %v2872 = vadd.f32 %v2552, %v2871
        %v2873 = vpop.f32.mrb[0].mxu0
        %2874 = vdwg.mxu0
        %v2875 = vadd.f32 %v2717, %v277
        %v2876 = vadd.f32 %v2722, %v278
        %v2877 = vadd.f32 %v2727, %v279
        %v2878 = vadd.f32 %v2732, %v280
        %v2879 = vadd.f32 %v2737, %v281
        %v2880 = vadd.f32 %v2742, %v282
        %v2881 = vadd.f32 %v2747, %v283
        %v2882 = vadd.f32 %v2752, %v284
        %v2883 = vadd.f32 %v2757, %v285
        %v2884 = vadd.f32 %v2762, %v286
        %v2885 = vadd.f32 %v2767, %v287
        %v2886 = vadd.f32 %v2772, %v288
        %v2887 = vadd.f32 %v2777, %v289
        %v2888 = vadd.f32 %v2782, %v290
        %v2889 = vadd.f32 %v2787, %v291
        %v2890 = vadd.f32 %v2792, %v292
        %v2891 = vadd.f32 %v2797, %v293
        %v2892 = vadd.f32 %v2802, %v294
        %v2893 = vadd.f32 %v2807, %v295
        %v2894 = vadd.f32 %v2812, %v296
        %v2895 = vadd.f32 %v2817, %v297
        %v2896 = vadd.f32 %v2822, %v298
        %v2897 = vadd.f32 %v2827, %v299
        %v2898 = vadd.f32 %v2832, %v300
        %v2899 = vadd.f32 %v2837, %v301
        %v2900 = vadd.f32 %v2842, %v302
        %v2901 = vadd.f32 %v2847, %v303
        %v2902 = vadd.f32 %v2852, %v304
        %v2903 = vadd.f32 %v2857, %v305
        %v2904 = vadd.f32 %v2862, %v306
        %v2905 = vadd.f32 %v2867, %v307
        %v2906 = vadd.f32 %v2872, %v308
        %v2907 = vmax.f32 %v2875, 0.0
        %v2908 = vmax.f32 %v2876, 0.0
        %v2909 = vmax.f32 %v2877, 0.0
        %v2910 = vmax.f32 %v2878, 0.0
        %v2911 = vmax.f32 %v2879, 0.0
        %v2912 = vmax.f32 %v2880, 0.0
        %v2913 = vmax.f32 %v2881, 0.0
        %v2914 = vmax.f32 %v2882, 0.0
        %v2915 = vmax.f32 %v2883, 0.0
        %v2916 = vmax.f32 %v2884, 0.0
        %v2917 = vmax.f32 %v2885, 0.0
        %v2918 = vmax.f32 %v2886, 0.0
        %v2919 = vmax.f32 %v2887, 0.0
        %v2920 = vmax.f32 %v2888, 0.0
        %v2921 = vmax.f32 %v2889, 0.0
        %v2922 = vmax.f32 %v2890, 0.0
        %v2923 = vmax.f32 %v2891, 0.0
        %v2924 = vmax.f32 %v2892, 0.0
        %v2925 = vmax.f32 %v2893, 0.0
        %v2926 = vmax.f32 %v2894, 0.0
        %v2927 = vmax.f32 %v2895, 0.0
        %v2928 = vmax.f32 %v2896, 0.0
        %v2929 = vmax.f32 %v2897, 0.0
        %v2930 = vmax.f32 %v2898, 0.0
        %v2931 = vmax.f32 %v2899, 0.0
        %v2932 = vmax.f32 %v2900, 0.0
        %v2933 = vmax.f32 %v2901, 0.0
        %v2934 = vmax.f32 %v2902, 0.0
        %v2935 = vmax.f32 %v2903, 0.0
        %v2936 = vmax.f32 %v2904, 0.0
        %v2937 = vmax.f32 %v2905, 0.0
        %v2938 = vmax.f32 %v2906, 0.0
        %2939 = vst.msk [vmem:[%s271] sm:$0xff] %vm367, %v2907
        %2940 = vst.msk [vmem:[%s271 + $0x8] sm:$0xff] %vm367, %v2908
        %2941 = vst.msk [vmem:[%s271 + $0x10] sm:$0xff] %vm367, %v2909
        %2942 = vst.msk [vmem:[%s271 + $0x18] sm:$0xff] %vm367, %v2910
        %2943 = vst.msk [vmem:[%s271 + $0x20] sm:$0xff] %vm367, %v2911
        %2944 = vst.msk [vmem:[%s271 + $0x28] sm:$0xff] %vm367, %v2912
        %2945 = vst.msk [vmem:[%s271 + $0x30] sm:$0xff] %vm367, %v2913
        %2946 = vst.msk [vmem:[%s271 + $0x38] sm:$0xff] %vm367, %v2914
        %2947 = vst.msk [vmem:[%s271 + $0x40] sm:$0xff] %vm367, %v2915
        %2948 = vst.msk [vmem:[%s271 + $0x48] sm:$0xff] %vm367, %v2916
        %2949 = vst.msk [vmem:[%s271 + $0x50] sm:$0xff] %vm367, %v2917
        %2950 = vst.msk [vmem:[%s271 + $0x58] sm:$0xff] %vm367, %v2918
        %2951 = vst.msk [vmem:[%s271 + $0x60] sm:$0xff] %vm367, %v2919
        %2952 = vst.msk [vmem:[%s271 + $0x68] sm:$0xff] %vm367, %v2920
        %2953 = vst.msk [vmem:[%s271 + $0x70] sm:$0xff] %vm367, %v2921
        %2954 = vst.msk [vmem:[%s271 + $0x78] sm:$0xff] %vm367, %v2922
        %2955 = vst.msk [vmem:[%s271 + $0x80] sm:$0xff] %vm367, %v2923
        %2956 = vst.msk [vmem:[%s271 + $0x88] sm:$0xff] %vm367, %v2924
        %2957 = vst.msk [vmem:[%s271 + $0x90] sm:$0xff] %vm367, %v2925
        %2958 = vst.msk [vmem:[%s271 + $0x98] sm:$0xff] %vm367, %v2926
        %2959 = vst.msk [vmem:[%s271 + $0xa0] sm:$0xff] %vm367, %v2927
        %2960 = vst.msk [vmem:[%s271 + $0xa8] sm:$0xff] %vm367, %v2928
        %2961 = vst.msk [vmem:[%s271 + $0xb0] sm:$0xff] %vm367, %v2929
        %2962 = vst.msk [vmem:[%s271 + $0xb8] sm:$0xff] %vm367, %v2930
        %2963 = vst.msk [vmem:[%s271 + $0xc0] sm:$0xff] %vm367, %v2931
        %2964 = vst.msk [vmem:[%s271 + $0xc8] sm:$0xff] %vm367, %v2932
        %2965 = vst.msk [vmem:[%s271 + $0xd0] sm:$0xff] %vm367, %v2933
        %2966 = vst.msk [vmem:[%s271 + $0xd8] sm:$0xff] %vm367, %v2934
        %2967 = vst.msk [vmem:[%s271 + $0xe0] sm:$0xff] %vm367, %v2935
        %2968 = vst.msk [vmem:[%s271 + $0xe8] sm:$0xff] %vm367, %v2936
        %2969 = vst.msk [vmem:[%s271 + $0xf0] sm:$0xff] %vm367, %v2937
        %2970 = vst.msk [vmem:[%s271 + $0xf8] sm:$0xff] %vm367, %v2938
        %s2971 = sand.u32 %s181, 1
        %s2972 = scalar_lea.sflag [#allocation4], %s2971
        %s2973 = sand.u32 %s181, 1
        %s2974 = smul.addr %s2973, 256
        %s2975 = scalar_lea.vmem [#allocation3], %s2974
        // Predicated region
        $region49: #{bottleneck_forward.1} parent=47 // pred_check
          %p2976 = pneg %p191
        $region50: #{bottleneck_forward.1} parent=47 // pred_check_branch
          %2978 = sbr.rel (%p2976) target = $region52
        $region51: #{bottleneck_forward.1} parent=47 // pred_region
          %s2980 = ssub.s32 4096, 4096
          %2981 = vsyncadd %s2972, %s2980
          %s2982 = smul.addr %s21, 32
          %s2983 = smul.addr %s2982, 128
          %s2984 = scalar_lea.hbm %s7, %s2983
          %s2985 = sshll.u32 %s2975, 4
          %s2986 = int_to_ptr.vmem [resolvable:$true] %s2985
          %2991 = dma.vmem_to_hbm [thread:$0]  %s2986, 4096, %s2984, %s2972, 128, 128, 8
        $region52: #{bottleneck_forward.1} parent=47 // pred_fallthru
          _
      $region48: #{bottleneck_forward.1} parent=5 // pred_fallthru
        _
      %p2992 = scmp.le.s32.totalorder 2, %s16
      // Predicated region
      $region53: #{bottleneck_forward.1} parent=5 // pred_check
        %p2993 = pneg %p2992
      $region54: #{bottleneck_forward.1} parent=5 // pred_check_branch
        %2995 = sbr.rel (%p2993) target = $region56
      $region55: #{bottleneck_forward.1} parent=5 // pred_region
        %s2996 = ssub.s32 %s16, 2
        // Predicated region
        $region57: #{bottleneck_forward.1} parent=55 // pred_check
          %p2997 = pneg %p197
        $region58: #{bottleneck_forward.1} parent=55 // pred_check_branch
          %2999 = sbr.rel (%p2997) target = $region60
        $region59: #{bottleneck_forward.1} parent=55 // pred_region
          %s3000 = sand.u32 %s182, 1
          %s3001 = scalar_lea.sflag [#allocation4], %s3000
          %s3002 = sand.u32 %s182, 1
          %s3003 = smul.addr %s3002, 256
          %s3004 = scalar_lea.vmem [#allocation3], %s3003
          %3005 = dma.done %s3001, 4096
        $region60: #{bottleneck_forward.1} parent=55 // pred_fallthru
          _
      $region56: #{bottleneck_forward.1} parent=5 // pred_fallthru
        _
    $region6: #{bottleneck_forward.1} parent=1 // loop_footer
      %s20 = sadd.s32 1, %s16
    $region7: #{bottleneck_forward.1} parent=1 // loop_footer_branch
      %15 = sbr.rel target = $region3
    $region8: #{bottleneck_forward.1} parent=1 // loop_exit
      _
    %3006 = vsyncpa [#allocation4], 1
    %s3007 = scalar_lea.sflag [#allocation4], 1
    %3008 = vsyncpa %s3007, 1

</llo_original>
